<compile_context>
chip_gen: v6e
topology: v6e:2x2x1
jax: 0.10.0
libtpu: 0.0.40
codegen_flags: <defaults>
</compile_context>

<pallas_src>
import math

import jax
import jax.numpy as jnp
from jax.experimental import pallas as pl
from jax.experimental.pallas import tpu as pltpu

# ----------------------------- config ---------------------------------------
B = 2          # batch
S = 8          # src_len
D = 32         # d_model
H = 4          # heads
DH = D // H    # dim per head
DFF = 64       # d_ff
BS = B * S
EPS = 1e-6
NEG_INF = -1e18     # OpenNMT masked_fill value for padded keys
CROSS_NEG = -1e30   # stronger penalty for cross-batch pairs (keeps fully-padded rows equivalent)

# weight-slab row layout (all weights packed into one (3D+DFF, 3D) f32 array)
R_QKV = 0            # rows [0, D)        cols [0, 3D)  : [Wq | Wk | Wv]
R_WO = D             # rows [D, 2D)       cols [0, D)   : Wo
R_W1 = 2 * D         # rows [2D, 3D)      cols [0, DFF) : W1
R_W2 = 3 * D         # rows [3D, 3D+DFF)  cols [0, D)   : W2
W_ROWS = 3 * D + DFF
W_COLS = 3 * D

# bias-slab row layout (one (8, 3D) f32 array)
BROW_G1, BROW_B1, BROW_G2, BROW_B2, BROW_QKV, BROW_O, BROW_F1, BROW_F2 = range(8)


# ----------------------------- kernel ---------------------------------------
def _layer_norm(v, g, b):
    # PyTorch LayerNorm: biased variance, eps inside sqrt
    mu = jnp.mean(v, axis=-1, keepdims=True)
    var = jnp.mean((v - mu) ** 2, axis=-1, keepdims=True)
    return (v - mu) * jax.lax.rsqrt(var + EPS) * g + b


def encoder_layer_kernel(x_ref, abias_ref, w_ref, b_ref, o_ref):
    x = x_ref[...]            # (BS, D) f32
    abias = abias_ref[...]    # (BS, BS) additive attention bias (pad + cross-batch)

    g1 = b_ref[BROW_G1:BROW_G1 + 1, 0:D]
    beta1 = b_ref[BROW_B1:BROW_B1 + 1, 0:D]
    g2 = b_ref[BROW_G2:BROW_G2 + 1, 0:D]
    beta2 = b_ref[BROW_B2:BROW_B2 + 1, 0:D]
    b_qkv = b_ref[BROW_QKV:BROW_QKV + 1, 0:3 * D]
    bo = b_ref[BROW_O:BROW_O + 1, 0:D]
    bf1 = b_ref[BROW_F1:BROW_F1 + 1, 0:DFF]
    bf2 = b_ref[BROW_F2:BROW_F2 + 1, 0:D]

    # ---- pre-attention LayerNorm -------------------------------------------
    xn = _layer_norm(x, g1, beta1)                                       # (BS, D)

    # ---- fused Q/K/V projection (single MXU push) ----------------------------
    qkv = jnp.dot(xn, w_ref[R_QKV:R_QKV + D, 0:3 * D],
                  preferred_element_type=jnp.float32) + b_qkv            # (BS, 3D)

    # ---- multi-head self attention, batched over B inside each head ----------
    scale = 1.0 / math.sqrt(DH)
    acc = jnp.zeros((BS, D), jnp.float32)
    for h in range(H):                                                   # static, H = 4
        q_h = qkv[:, h * DH:(h + 1) * DH] * scale                        # (BS, DH)
        k_h = qkv[:, D + h * DH:D + (h + 1) * DH]                        # (BS, DH)
        v_h = qkv[:, 2 * D + h * DH:2 * D + (h + 1) * DH]                # (BS, DH)
        s = jnp.dot(q_h, k_h.T, preferred_element_type=jnp.float32) + abias   # (BS, BS)
        s = s - jnp.max(s, axis=-1, keepdims=True)
        p = jnp.exp(s)
        p = p * pl.reciprocal(jnp.sum(p, axis=-1, keepdims=True), approx=True)
        ctx_h = jnp.dot(p, v_h, preferred_element_type=jnp.float32)      # (BS, DH)
        # accumulate output projection per head: avoids lane concat of head contexts
        acc = acc + jnp.dot(ctx_h, w_ref[R_WO + h * DH:R_WO + (h + 1) * DH, 0:D],
                            preferred_element_type=jnp.float32)          # (BS, D)

    # dropout(context) + inputs  (dropout = identity at inference)
    mid = acc + bo + x                                                   # (BS, D)

    # ---- PositionwiseFeedForward: LN -> W1 -> ReLU -> W2 -> +residual --------
    yn = _layer_norm(mid, g2, beta2)
    hdn = jnp.dot(yn, w_ref[R_W1:R_W1 + D, 0:DFF],
                  preferred_element_type=jnp.float32) + bf1
    hdn = jnp.maximum(hdn, 0.0)
    ff = jnp.dot(hdn, w_ref[R_W2:R_W2 + DFF, 0:D],
                 preferred_element_type=jnp.float32) + bf2
    o_ref[...] = ff + mid


# ----------------------------- wrapper ---------------------------------------
def _pack_params(p):
    w_slab = jnp.zeros((W_ROWS, W_COLS), jnp.float32)
    w_slab = w_slab.at[R_QKV:R_QKV + D, 0:3 * D].set(
        jnp.concatenate([p["wq"], p["wk"], p["wv"]], axis=1))
    w_slab = w_slab.at[R_WO:R_WO + D, 0:D].set(p["wo"])
    w_slab = w_slab.at[R_W1:R_W1 + D, 0:DFF].set(p["w1"])
    w_slab = w_slab.at[R_W2:R_W2 + DFF, 0:D].set(p["w2"])

    b_slab = jnp.zeros((8, W_COLS), jnp.float32)
    b_slab = b_slab.at[BROW_G1, 0:D].set(p["g1"].reshape(D))
    b_slab = b_slab.at[BROW_B1, 0:D].set(p["b1"].reshape(D))
    b_slab = b_slab.at[BROW_G2, 0:D].set(p["g2"].reshape(D))
    b_slab = b_slab.at[BROW_B2, 0:D].set(p["b2"].reshape(D))
    b_slab = b_slab.at[BROW_QKV, 0:3 * D].set(
        jnp.concatenate([p["bq"], p["bk"], p["bv"]], axis=1).reshape(3 * D))
    b_slab = b_slab.at[BROW_O, 0:D].set(p["bo"].reshape(D))
    b_slab = b_slab.at[BROW_F1, 0:DFF].set(p["bf1"].reshape(DFF))
    b_slab = b_slab.at[BROW_F2, 0:D].set(p["bf2"].reshape(D))
    return w_slab, b_slab


def _attn_bias_from_mask(mask):
    """mask (B,1,S) int, 1 = padded key -> additive bias (BS, BS) f32 encoding padding
    AND block-diagonal batch separation (so one kernel step handles all batches)."""
    key_pad = (mask.reshape(B, S) > 0).reshape(1, BS)                # (1, BS)
    pad_bias = jnp.where(key_pad, jnp.float32(NEG_INF), jnp.float32(0.0))
    batch_of = jnp.arange(BS) // S
    same_batch = batch_of[:, None] == batch_of[None, :]              # (BS, BS)
    return jnp.where(same_batch, pad_bias, jnp.float32(CROSS_NEG))


def transformer_encoder_layer(x, mask, params):
    """x: (B, S, D) f32, mask: (B, 1, S) int32 (1 = pad)."""
    x2 = x.reshape(BS, D)                       # free layout reshape, sublane-stacks batches
    attn_bias = _attn_bias_from_mask(mask)
    w_slab, b_slab = _pack_params(params)

    full = lambda shape: pl.BlockSpec(shape, lambda i: tuple(0 for _ in shape))

    out = pl.pallas_call(
        encoder_layer_kernel,
        out_shape=jax.ShapeDtypeStruct((BS, D), jnp.float32),
        grid_spec=pltpu.PrefetchScalarGridSpec(
            num_scalar_prefetch=0,
            grid=(1,),                          # single step: whole problem fits in VMEM (~100 KB)
            in_specs=[
                full((BS, D)),                  # x (flattened)
                full((BS, BS)),                 # additive attention bias
                full((W_ROWS, W_COLS)),         # packed weights
                full((8, W_COLS)),              # packed biases / LN params
            ],
            out_specs=full((BS, D)),
        ),
        compiler_params=pltpu.CompilerParams(dimension_semantics=("arbitrary",)),
    )(x2, attn_bias, w_slab, b_slab)
    return out.reshape(B, S, D)


# ----------------------------- pure-JAX reference ----------------------------
def reference_forward(x, mask, p):
    def ln(v, g, b):
        mu = jnp.mean(v, axis=-1, keepdims=True)
        var = jnp.mean((v - mu) ** 2, axis=-1, keepdims=True)
        return (v - mu) / jnp.sqrt(var + EPS) * g + b

    xn = ln(x, p["g1"], p["b1"])
    q = xn @ p["wq"] + p["bq"]
    k = xn @ p["wk"] + p["bk"]
    v = xn @ p["wv"] + p["bv"]

    def split(t):  # (B,S,D) -> (B,H,S,DH)
        return t.reshape(B, S, H, DH).transpose(0, 2, 1, 3)

    qh, kh, vh = split(q) / math.sqrt(DH), split(k), split(v)
    scores = jnp.einsum("bhqd,bhkd->bhqk", qh, kh)
    m = (mask[:, None, :, :] > 0)                      # (B,1,1,S)
    scores = jnp.where(m, NEG_INF, scores)
    attn = jax.nn.softmax(scores, axis=-1)
    ctx = jnp.einsum("bhqk,bhkd->bhqd", attn, vh).transpose(0, 2, 1, 3).reshape(B, S, D)
    attn_out = ctx @ p["wo"] + p["bo"]
    mid = attn_out + x
    yn = ln(mid, p["g2"], p["b2"])
    ff = jnp.maximum(yn @ p["w1"] + p["bf1"], 0.0) @ p["w2"] + p["bf2"]
    return ff + mid


# ----------------------------- main ------------------------------------------
if __name__ == "__main__":
    key = jax.random.PRNGKey(0)
    ks = jax.random.split(key, 12)

    def nrm(k, shape, scale=0.05):
        return jax.random.normal(k, shape, dtype=jnp.float32) * scale

    params = {
        "g1": jnp.ones((1, D), jnp.float32),  "b1": jnp.zeros((1, D), jnp.float32),
        "wq": nrm(ks[0], (D, D)),  "bq": nrm(ks[1], (1, D)),
        "wk": nrm(ks[2], (D, D)),  "bk": nrm(ks[3], (1, D)),
        "wv": nrm(ks[4], (D, D)),  "bv": nrm(ks[5], (1, D)),
        "wo": nrm(ks[6], (D, D)),  "bo": nrm(ks[7], (1, D)),
        "g2": jnp.ones((1, D), jnp.float32),  "b2": jnp.zeros((1, D), jnp.float32),
        "w1": nrm(ks[8], (D, DFF)),  "bf1": nrm(ks[9], (1, DFF)),
        "w2": nrm(ks[10], (DFF, D)), "bf2": nrm(ks[11], (1, D)),
    }

    x = jax.random.normal(jax.random.PRNGKey(42), (B, S, D), dtype=jnp.float32)
    # mask: (B, 1, S), 1 = padded key position (last 2 positions of batch 1 are pad)
    mask = jnp.zeros((B, 1, S), jnp.int32).at[1, 0, S - 2:].set(1)

    out = transformer_encoder_layer(x, mask, params)
    out = jax.block_until_ready(out)

    ref = reference_forward(x, mask, params)
    assert out.shape == (B, S, D)
    # tolerance slightly above 1e-3 to leave headroom for the EUP approx reciprocal in softmax
    assert jnp.allclose(out, ref, atol=2e-3, rtol=2e-3), "mismatch vs reference"

    print("KERNEL_OK")
</pallas_src>

<mosaic_0001>
module attributes {stable_mosaic.version = 11 : i64} {
  func.func @encoder_layer_kernel(%arg0: i32, %arg1: memref<16x32xf32, #tpu.memory_space<vmem>>, %arg2: memref<16x16xf32, #tpu.memory_space<vmem>>, %arg3: memref<160x96xf32, #tpu.memory_space<vmem>>, %arg4: memref<8x96xf32, #tpu.memory_space<vmem>>, %arg5: memref<16x32xf32, #tpu.memory_space<vmem>>) attributes {dimension_semantics = [#tpu.dimension_semantics<arbitrary>], iteration_bounds = array<i64: 1>, scalar_prefetch = 0 : i64, scratch_operands = 0 : i64, tpu.core_type = #tpu.core_type<tc>, window_params = [{pipeline_mode = #tpu.pipeline_mode<synchronous>, transform_indices = @transform_0, window_bounds = array<i64: 16, 32>}, {pipeline_mode = #tpu.pipeline_mode<synchronous>, transform_indices = @transform_1, window_bounds = array<i64: 16, 16>}, {pipeline_mode = #tpu.pipeline_mode<synchronous>, transform_indices = @transform_2, window_bounds = array<i64: 160, 96>}, {pipeline_mode = #tpu.pipeline_mode<synchronous>, transform_indices = @transform_3, window_bounds = array<i64: 8, 96>}, {pipeline_mode = #tpu.pipeline_mode<synchronous>, transform_indices = @transform_4, window_bounds = array<i64: 16, 32>}]} {
    %c0 = arith.constant 0 : index
    %c0_0 = arith.constant 0 : index
    %0 = vector.load %arg1[%c0, %c0_0] : memref<16x32xf32, #tpu.memory_space<vmem>>, vector<16x32xf32>
    %c0_1 = arith.constant 0 : index
    %c0_2 = arith.constant 0 : index
    %1 = vector.load %arg2[%c0_1, %c0_2] : memref<16x16xf32, #tpu.memory_space<vmem>>, vector<16x16xf32>
    %c0_3 = arith.constant 0 : index
    %c0_4 = arith.constant 0 : index
    %2 = vector.load %arg4[%c0_3, %c0_4] : memref<8x96xf32, #tpu.memory_space<vmem>>, vector<1x32xf32>
    %c1 = arith.constant 1 : index
    %c0_5 = arith.constant 0 : index
    %3 = vector.load %arg4[%c1, %c0_5] : memref<8x96xf32, #tpu.memory_space<vmem>>, vector<1x32xf32>
    %c2 = arith.constant 2 : index
    %c0_6 = arith.constant 0 : index
    %4 = vector.load %arg4[%c2, %c0_6] : memref<8x96xf32, #tpu.memory_space<vmem>>, vector<1x32xf32>
    %c3 = arith.constant 3 : index
    %c0_7 = arith.constant 0 : index
    %5 = vector.load %arg4[%c3, %c0_7] : memref<8x96xf32, #tpu.memory_space<vmem>>, vector<1x32xf32>
    %c4 = arith.constant 4 : index
    %c0_8 = arith.constant 0 : index
    %6 = vector.load %arg4[%c4, %c0_8] : memref<8x96xf32, #tpu.memory_space<vmem>>, vector<1x96xf32>
    %c5 = arith.constant 5 : index
    %c0_9 = arith.constant 0 : index
    %7 = vector.load %arg4[%c5, %c0_9] : memref<8x96xf32, #tpu.memory_space<vmem>>, vector<1x32xf32>
    %c6 = arith.constant 6 : index
    %c0_10 = arith.constant 0 : index
    %8 = vector.load %arg4[%c6, %c0_10] : memref<8x96xf32, #tpu.memory_space<vmem>>, vector<1x64xf32>
    %c7 = arith.constant 7 : index
    %c0_11 = arith.constant 0 : index
    %9 = vector.load %arg4[%c7, %c0_11] : memref<8x96xf32, #tpu.memory_space<vmem>>, vector<1x32xf32>
    %cst = arith.constant dense<0.000000e+00> : vector<16xf32>
    %10 = vector.multi_reduction <add>, %0, %cst [1] : vector<16x32xf32> to vector<16xf32>
    %11 = vector.shape_cast %10 : vector<16xf32> to vector<16x1xf32>
    %cst_12 = arith.constant 3.200000e+01 : f32
    %12 = vector.broadcast %cst_12 : f32 to vector<16x1xf32>
    %13 = arith.divf %11, %12 : vector<16x1xf32>
    %14 = vector.broadcast %13 : vector<16x1xf32> to vector<16x32xf32>
    %15 = arith.subf %0, %14 : vector<16x32xf32>
    %16 = arith.mulf %15, %15 : vector<16x32xf32>
    %cst_13 = arith.constant dense<0.000000e+00> : vector<16xf32>
    %17 = vector.multi_reduction <add>, %16, %cst_13 [1] : vector<16x32xf32> to vector<16xf32>
    %18 = vector.shape_cast %17 : vector<16xf32> to vector<16x1xf32>
    %cst_14 = arith.constant 3.200000e+01 : f32
    %19 = vector.broadcast %cst_14 : f32 to vector<16x1xf32>
    %20 = arith.divf %18, %19 : vector<16x1xf32>
    %21 = vector.broadcast %13 : vector<16x1xf32> to vector<16x32xf32>
    %22 = arith.subf %0, %21 : vector<16x32xf32>
    %cst_15 = arith.constant 9.99999997E-7 : f32
    %23 = vector.broadcast %cst_15 : f32 to vector<16x1xf32>
    %24 = arith.addf %20, %23 : vector<16x1xf32>
    %25 = math.rsqrt %24 : vector<16x1xf32>
    %26 = vector.broadcast %25 : vector<16x1xf32> to vector<16x32xf32>
    %27 = arith.mulf %22, %26 : vector<16x32xf32>
    %28 = vector.broadcast %2 : vector<1x32xf32> to vector<16x32xf32>
    %29 = arith.mulf %27, %28 : vector<16x32xf32>
    %30 = vector.broadcast %3 : vector<1x32xf32> to vector<16x32xf32>
    %31 = arith.addf %29, %30 : vector<16x32xf32>
    %c0_16 = arith.constant 0 : index
    %c0_17 = arith.constant 0 : index
    %32 = vector.load %arg3[%c0_16, %c0_17] : memref<160x96xf32, #tpu.memory_space<vmem>>, vector<32x96xf32>
    %cst_18 = arith.constant dense<0.000000e+00> : vector<16x96xf32>
    %33 = tpu.matmul %31, %32, %cst_18 {dimension_numbers = #tpu.dot_dimension_numbers<[1], [0], [0], [1], [0, 0, 1, 1], [], []>} : vector<16x32xf32>, vector<32x96xf32>, vector<16x96xf32> -> vector<16x96xf32>
    %34 = vector.broadcast %6 : vector<1x96xf32> to vector<16x96xf32>
    %35 = arith.addf %33, %34 : vector<16x96xf32>
    %cst_19 = arith.constant 0.000000e+00 : f32
    %36 = vector.broadcast %cst_19 : f32 to vector<16x32xf32>
    %37 = vector.extract_strided_slice %35 {offsets = [0, 0], sizes = [16, 8], strides = [1, 1]} : vector<16x96xf32> to vector<16x8xf32>
    %cst_20 = arith.constant 0.353553385 : f32
    %38 = vector.broadcast %cst_20 : f32 to vector<16x8xf32>
    %39 = arith.mulf %37, %38 : vector<16x8xf32>
    %40 = vector.extract_strided_slice %35 {offsets = [0, 32], sizes = [16, 8], strides = [1, 1]} : vector<16x96xf32> to vector<16x8xf32>
    %41 = vector.extract_strided_slice %35 {offsets = [0, 64], sizes = [16, 8], strides = [1, 1]} : vector<16x96xf32> to vector<16x8xf32>
    %42 = tpu.transpose %40, [1, 0] : vector<16x8xf32> -> vector<8x16xf32>
    %cst_21 = arith.constant dense<0.000000e+00> : vector<16x16xf32>
    %43 = tpu.matmul %39, %42, %cst_21 {dimension_numbers = #tpu.dot_dimension_numbers<[1], [0], [0], [1], [0, 0, 1, 1], [], []>} : vector<16x8xf32>, vector<8x16xf32>, vector<16x16xf32> -> vector<16x16xf32>
    %44 = arith.addf %43, %1 : vector<16x16xf32>
    %cst_22 = arith.constant dense<0xFF800000> : vector<16xf32>
    %45 = vector.multi_reduction <maximumf>, %44, %cst_22 [1] : vector<16x16xf32> to vector<16xf32>
    %46 = vector.shape_cast %45 : vector<16xf32> to vector<16x1xf32>
    %47 = vector.broadcast %46 : vector<16x1xf32> to vector<16x16xf32>
    %48 = arith.subf %44, %47 : vector<16x16xf32>
    %49 = math.exp %48 : vector<16x16xf32>
    %cst_23 = arith.constant dense<0.000000e+00> : vector<16xf32>
    %50 = vector.multi_reduction <add>, %49, %cst_23 [1] : vector<16x16xf32> to vector<16xf32>
    %51 = vector.shape_cast %50 : vector<16xf32> to vector<16x1xf32>
    %52 = tpu.reciprocal %51 {approx = true} : vector<16x1xf32> -> vector<16x1xf32>
    %53 = vector.broadcast %52 : vector<16x1xf32> to vector<16x16xf32>
    %54 = arith.mulf %49, %53 : vector<16x16xf32>
    %cst_24 = arith.constant dense<0.000000e+00> : vector<16x8xf32>
    %55 = tpu.matmul %54, %41, %cst_24 {dimension_numbers = #tpu.dot_dimension_numbers<[1], [0], [0], [1], [0, 0, 1, 1], [], []>} : vector<16x16xf32>, vector<16x8xf32>, vector<16x8xf32> -> vector<16x8xf32>
    %c32 = arith.constant 32 : index
    %c0_25 = arith.constant 0 : index
    %56 = vector.load %arg3[%c32, %c0_25] : memref<160x96xf32, #tpu.memory_space<vmem>>, vector<8x32xf32>
    %cst_26 = arith.constant dense<0.000000e+00> : vector<16x32xf32>
    %57 = tpu.matmul %55, %56, %cst_26 {dimension_numbers = #tpu.dot_dimension_numbers<[1], [0], [0], [1], [0, 0, 1, 1], [], []>} : vector<16x8xf32>, vector<8x32xf32>, vector<16x32xf32> -> vector<16x32xf32>
    %58 = arith.addf %36, %57 : vector<16x32xf32>
    %59 = vector.extract_strided_slice %35 {offsets = [0, 8], sizes = [16, 8], strides = [1, 1]} : vector<16x96xf32> to vector<16x8xf32>
    %cst_27 = arith.constant 0.353553385 : f32
    %60 = vector.broadcast %cst_27 : f32 to vector<16x8xf32>
    %61 = arith.mulf %59, %60 : vector<16x8xf32>
    %62 = vector.extract_strided_slice %35 {offsets = [0, 40], sizes = [16, 8], strides = [1, 1]} : vector<16x96xf32> to vector<16x8xf32>
    %63 = vector.extract_strided_slice %35 {offsets = [0, 72], sizes = [16, 8], strides = [1, 1]} : vector<16x96xf32> to vector<16x8xf32>
    %64 = tpu.transpose %62, [1, 0] : vector<16x8xf32> -> vector<8x16xf32>
    %cst_28 = arith.constant dense<0.000000e+00> : vector<16x16xf32>
    %65 = tpu.matmul %61, %64, %cst_28 {dimension_numbers = #tpu.dot_dimension_numbers<[1], [0], [0], [1], [0, 0, 1, 1], [], []>} : vector<16x8xf32>, vector<8x16xf32>, vector<16x16xf32> -> vector<16x16xf32>
    %66 = arith.addf %65, %1 : vector<16x16xf32>
    %cst_29 = arith.constant dense<0xFF800000> : vector<16xf32>
    %67 = vector.multi_reduction <maximumf>, %66, %cst_29 [1] : vector<16x16xf32> to vector<16xf32>
    %68 = vector.shape_cast %67 : vector<16xf32> to vector<16x1xf32>
    %69 = vector.broadcast %68 : vector<16x1xf32> to vector<16x16xf32>
    %70 = arith.subf %66, %69 : vector<16x16xf32>
    %71 = math.exp %70 : vector<16x16xf32>
    %cst_30 = arith.constant dense<0.000000e+00> : vector<16xf32>
    %72 = vector.multi_reduction <add>, %71, %cst_30 [1] : vector<16x16xf32> to vector<16xf32>
    %73 = vector.shape_cast %72 : vector<16xf32> to vector<16x1xf32>
    %74 = tpu.reciprocal %73 {approx = true} : vector<16x1xf32> -> vector<16x1xf32>
    %75 = vector.broadcast %74 : vector<16x1xf32> to vector<16x16xf32>
    %76 = arith.mulf %71, %75 : vector<16x16xf32>
    %cst_31 = arith.constant dense<0.000000e+00> : vector<16x8xf32>
    %77 = tpu.matmul %76, %63, %cst_31 {dimension_numbers = #tpu.dot_dimension_numbers<[1], [0], [0], [1], [0, 0, 1, 1], [], []>} : vector<16x16xf32>, vector<16x8xf32>, vector<16x8xf32> -> vector<16x8xf32>
    %c40 = arith.constant 40 : index
    %c0_32 = arith.constant 0 : index
    %78 = vector.load %arg3[%c40, %c0_32] : memref<160x96xf32, #tpu.memory_space<vmem>>, vector<8x32xf32>
    %cst_33 = arith.constant dense<0.000000e+00> : vector<16x32xf32>
    %79 = tpu.matmul %77, %78, %cst_33 {dimension_numbers = #tpu.dot_dimension_numbers<[1], [0], [0], [1], [0, 0, 1, 1], [], []>} : vector<16x8xf32>, vector<8x32xf32>, vector<16x32xf32> -> vector<16x32xf32>
    %80 = arith.addf %58, %79 : vector<16x32xf32>
    %81 = vector.extract_strided_slice %35 {offsets = [0, 16], sizes = [16, 8], strides = [1, 1]} : vector<16x96xf32> to vector<16x8xf32>
    %cst_34 = arith.constant 0.353553385 : f32
    %82 = vector.broadcast %cst_34 : f32 to vector<16x8xf32>
    %83 = arith.mulf %81, %82 : vector<16x8xf32>
    %84 = vector.extract_strided_slice %35 {offsets = [0, 48], sizes = [16, 8], strides = [1, 1]} : vector<16x96xf32> to vector<16x8xf32>
    %85 = vector.extract_strided_slice %35 {offsets = [0, 80], sizes = [16, 8], strides = [1, 1]} : vector<16x96xf32> to vector<16x8xf32>
    %86 = tpu.transpose %84, [1, 0] : vector<16x8xf32> -> vector<8x16xf32>
    %cst_35 = arith.constant dense<0.000000e+00> : vector<16x16xf32>
    %87 = tpu.matmul %83, %86, %cst_35 {dimension_numbers = #tpu.dot_dimension_numbers<[1], [0], [0], [1], [0, 0, 1, 1], [], []>} : vector<16x8xf32>, vector<8x16xf32>, vector<16x16xf32> -> vector<16x16xf32>
    %88 = arith.addf %87, %1 : vector<16x16xf32>
    %cst_36 = arith.constant dense<0xFF800000> : vector<16xf32>
    %89 = vector.multi_reduction <maximumf>, %88, %cst_36 [1] : vector<16x16xf32> to vector<16xf32>
    %90 = vector.shape_cast %89 : vector<16xf32> to vector<16x1xf32>
    %91 = vector.broadcast %90 : vector<16x1xf32> to vector<16x16xf32>
    %92 = arith.subf %88, %91 : vector<16x16xf32>
    %93 = math.exp %92 : vector<16x16xf32>
    %cst_37 = arith.constant dense<0.000000e+00> : vector<16xf32>
    %94 = vector.multi_reduction <add>, %93, %cst_37 [1] : vector<16x16xf32> to vector<16xf32>
    %95 = vector.shape_cast %94 : vector<16xf32> to vector<16x1xf32>
    %96 = tpu.reciprocal %95 {approx = true} : vector<16x1xf32> -> vector<16x1xf32>
    %97 = vector.broadcast %96 : vector<16x1xf32> to vector<16x16xf32>
    %98 = arith.mulf %93, %97 : vector<16x16xf32>
    %cst_38 = arith.constant dense<0.000000e+00> : vector<16x8xf32>
    %99 = tpu.matmul %98, %85, %cst_38 {dimension_numbers = #tpu.dot_dimension_numbers<[1], [0], [0], [1], [0, 0, 1, 1], [], []>} : vector<16x16xf32>, vector<16x8xf32>, vector<16x8xf32> -> vector<16x8xf32>
    %c48 = arith.constant 48 : index
    %c0_39 = arith.constant 0 : index
    %100 = vector.load %arg3[%c48, %c0_39] : memref<160x96xf32, #tpu.memory_space<vmem>>, vector<8x32xf32>
    %cst_40 = arith.constant dense<0.000000e+00> : vector<16x32xf32>
    %101 = tpu.matmul %99, %100, %cst_40 {dimension_numbers = #tpu.dot_dimension_numbers<[1], [0], [0], [1], [0, 0, 1, 1], [], []>} : vector<16x8xf32>, vector<8x32xf32>, vector<16x32xf32> -> vector<16x32xf32>
    %102 = arith.addf %80, %101 : vector<16x32xf32>
    %103 = vector.extract_strided_slice %35 {offsets = [0, 24], sizes = [16, 8], strides = [1, 1]} : vector<16x96xf32> to vector<16x8xf32>
    %cst_41 = arith.constant 0.353553385 : f32
    %104 = vector.broadcast %cst_41 : f32 to vector<16x8xf32>
    %105 = arith.mulf %103, %104 : vector<16x8xf32>
    %106 = vector.extract_strided_slice %35 {offsets = [0, 56], sizes = [16, 8], strides = [1, 1]} : vector<16x96xf32> to vector<16x8xf32>
    %107 = vector.extract_strided_slice %35 {offsets = [0, 88], sizes = [16, 8], strides = [1, 1]} : vector<16x96xf32> to vector<16x8xf32>
    %108 = tpu.transpose %106, [1, 0] : vector<16x8xf32> -> vector<8x16xf32>
    %cst_42 = arith.constant dense<0.000000e+00> : vector<16x16xf32>
    %109 = tpu.matmul %105, %108, %cst_42 {dimension_numbers = #tpu.dot_dimension_numbers<[1], [0], [0], [1], [0, 0, 1, 1], [], []>} : vector<16x8xf32>, vector<8x16xf32>, vector<16x16xf32> -> vector<16x16xf32>
    %110 = arith.addf %109, %1 : vector<16x16xf32>
    %cst_43 = arith.constant dense<0xFF800000> : vector<16xf32>
    %111 = vector.multi_reduction <maximumf>, %110, %cst_43 [1] : vector<16x16xf32> to vector<16xf32>
    %112 = vector.shape_cast %111 : vector<16xf32> to vector<16x1xf32>
    %113 = vector.broadcast %112 : vector<16x1xf32> to vector<16x16xf32>
    %114 = arith.subf %110, %113 : vector<16x16xf32>
    %115 = math.exp %114 : vector<16x16xf32>
    %cst_44 = arith.constant dense<0.000000e+00> : vector<16xf32>
    %116 = vector.multi_reduction <add>, %115, %cst_44 [1] : vector<16x16xf32> to vector<16xf32>
    %117 = vector.shape_cast %116 : vector<16xf32> to vector<16x1xf32>
    %118 = tpu.reciprocal %117 {approx = true} : vector<16x1xf32> -> vector<16x1xf32>
    %119 = vector.broadcast %118 : vector<16x1xf32> to vector<16x16xf32>
    %120 = arith.mulf %115, %119 : vector<16x16xf32>
    %cst_45 = arith.constant dense<0.000000e+00> : vector<16x8xf32>
    %121 = tpu.matmul %120, %107, %cst_45 {dimension_numbers = #tpu.dot_dimension_numbers<[1], [0], [0], [1], [0, 0, 1, 1], [], []>} : vector<16x16xf32>, vector<16x8xf32>, vector<16x8xf32> -> vector<16x8xf32>
    %c56 = arith.constant 56 : index
    %c0_46 = arith.constant 0 : index
    %122 = vector.load %arg3[%c56, %c0_46] : memref<160x96xf32, #tpu.memory_space<vmem>>, vector<8x32xf32>
    %cst_47 = arith.constant dense<0.000000e+00> : vector<16x32xf32>
    %123 = tpu.matmul %121, %122, %cst_47 {dimension_numbers = #tpu.dot_dimension_numbers<[1], [0], [0], [1], [0, 0, 1, 1], [], []>} : vector<16x8xf32>, vector<8x32xf32>, vector<16x32xf32> -> vector<16x32xf32>
    %124 = arith.addf %102, %123 : vector<16x32xf32>
    %125 = vector.broadcast %7 : vector<1x32xf32> to vector<16x32xf32>
    %126 = arith.addf %124, %125 : vector<16x32xf32>
    %127 = arith.addf %126, %0 : vector<16x32xf32>
    %cst_48 = arith.constant dense<0.000000e+00> : vector<16xf32>
    %128 = vector.multi_reduction <add>, %127, %cst_48 [1] : vector<16x32xf32> to vector<16xf32>
    %129 = vector.shape_cast %128 : vector<16xf32> to vector<16x1xf32>
    %cst_49 = arith.constant 3.200000e+01 : f32
    %130 = vector.broadcast %cst_49 : f32 to vector<16x1xf32>
    %131 = arith.divf %129, %130 : vector<16x1xf32>
    %132 = vector.broadcast %131 : vector<16x1xf32> to vector<16x32xf32>
    %133 = arith.subf %127, %132 : vector<16x32xf32>
    %134 = arith.mulf %133, %133 : vector<16x32xf32>
    %cst_50 = arith.constant dense<0.000000e+00> : vector<16xf32>
    %135 = vector.multi_reduction <add>, %134, %cst_50 [1] : vector<16x32xf32> to vector<16xf32>
    %136 = vector.shape_cast %135 : vector<16xf32> to vector<16x1xf32>
    %cst_51 = arith.constant 3.200000e+01 : f32
    %137 = vector.broadcast %cst_51 : f32 to vector<16x1xf32>
    %138 = arith.divf %136, %137 : vector<16x1xf32>
    %139 = vector.broadcast %131 : vector<16x1xf32> to vector<16x32xf32>
    %140 = arith.subf %127, %139 : vector<16x32xf32>
    %cst_52 = arith.constant 9.99999997E-7 : f32
    %141 = vector.broadcast %cst_52 : f32 to vector<16x1xf32>
    %142 = arith.addf %138, %141 : vector<16x1xf32>
    %143 = math.rsqrt %142 : vector<16x1xf32>
    %144 = vector.broadcast %143 : vector<16x1xf32> to vector<16x32xf32>
    %145 = arith.mulf %140, %144 : vector<16x32xf32>
    %146 = vector.broadcast %4 : vector<1x32xf32> to vector<16x32xf32>
    %147 = arith.mulf %145, %146 : vector<16x32xf32>
    %148 = vector.broadcast %5 : vector<1x32xf32> to vector<16x32xf32>
    %149 = arith.addf %147, %148 : vector<16x32xf32>
    %c64 = arith.constant 64 : index
    %c0_53 = arith.constant 0 : index
    %150 = vector.load %arg3[%c64, %c0_53] : memref<160x96xf32, #tpu.memory_space<vmem>>, vector<32x64xf32>
    %cst_54 = arith.constant dense<0.000000e+00> : vector<16x64xf32>
    %151 = tpu.matmul %149, %150, %cst_54 {dimension_numbers = #tpu.dot_dimension_numbers<[1], [0], [0], [1], [0, 0, 1, 1], [], []>} : vector<16x32xf32>, vector<32x64xf32>, vector<16x64xf32> -> vector<16x64xf32>
    %152 = vector.broadcast %8 : vector<1x64xf32> to vector<16x64xf32>
    %153 = arith.addf %151, %152 : vector<16x64xf32>
    %cst_55 = arith.constant 0.000000e+00 : f32
    %154 = vector.broadcast %cst_55 : f32 to vector<16x64xf32>
    %155 = arith.maximumf %153, %154 : vector<16x64xf32>
    %c96 = arith.constant 96 : index
    %c0_56 = arith.constant 0 : index
    %156 = vector.load %arg3[%c96, %c0_56] : memref<160x96xf32, #tpu.memory_space<vmem>>, vector<64x32xf32>
    %cst_57 = arith.constant dense<0.000000e+00> : vector<16x32xf32>
    %157 = tpu.matmul %155, %156, %cst_57 {dimension_numbers = #tpu.dot_dimension_numbers<[1], [0], [0], [1], [0, 0, 1, 1], [], []>} : vector<16x64xf32>, vector<64x32xf32>, vector<16x32xf32> -> vector<16x32xf32>
    %158 = vector.broadcast %9 : vector<1x32xf32> to vector<16x32xf32>
    %159 = arith.addf %157, %158 : vector<16x32xf32>
    %160 = arith.addf %159, %127 : vector<16x32xf32>
    %c0_58 = arith.constant 0 : index
    %c0_59 = arith.constant 0 : index
    %161 = vector.load %arg5[%c0_58, %c0_59] : memref<16x32xf32, #tpu.memory_space<vmem>>, vector<16x32xf32>
    tpu.vector_store %arg5[%c0_58, %c0_59], %160 {strides = array<i32>} : memref<16x32xf32, #tpu.memory_space<vmem>>, vector<16x32xf32>,
    return
  }
  func.func @transform_0(%arg0: i32) -> (i32, i32) {
    %c0_i32 = arith.constant 0 : i32
    %c0_i32_0 = arith.constant 0 : i32
    %c0_i32_1 = arith.constant 0 : i32
    return %c0_i32, %c0_i32_0 : i32, i32
  }
  func.func @transform_1(%arg0: i32) -> (i32, i32) {
    %c0_i32 = arith.constant 0 : i32
    %c0_i32_0 = arith.constant 0 : i32
    %c0_i32_1 = arith.constant 0 : i32
    return %c0_i32, %c0_i32_0 : i32, i32
  }
  func.func @transform_2(%arg0: i32) -> (i32, i32) {
    %c0_i32 = arith.constant 0 : i32
    %c0_i32_0 = arith.constant 0 : i32
    %c0_i32_1 = arith.constant 0 : i32
    return %c0_i32, %c0_i32_0 : i32, i32
  }
  func.func @transform_3(%arg0: i32) -> (i32, i32) {
    %c0_i32 = arith.constant 0 : i32
    %c0_i32_0 = arith.constant 0 : i32
    %c0_i32_1 = arith.constant 0 : i32
    return %c0_i32, %c0_i32_0 : i32, i32
  }
  func.func @transform_4(%arg0: i32) -> (i32, i32) {
    %c0_i32 = arith.constant 0 : i32
    %c0_i32_0 = arith.constant 0 : i32
    %c0_i32_1 = arith.constant 0 : i32
    return %c0_i32, %c0_i32_0 : i32, i32
  }
}

</mosaic_0001>

<llo_original>
// kernel: tpu_custom_call.1
$region0: #{tpu_custom_call.1}
  #allocation0 [shape = 'u32[]', space=smem, size = 0x4, offset = 0x4, fixed_abs, tag = 'smem constant byte address 0x4 - core index']
  #allocation1 [shape = 'u32[144,128]{1,0:T(1,128)}', space=vmem, size = 0x12000, scoped, tag = 'internal scratch']
  %s0 = inlined_call_operand.hbm [shape: f32[16,32], index: 0, kind: input, shape index: {}]
  %s1 = inlined_call_operand.hbm [shape: f32[16,16], index: 1, kind: input, shape index: {}]
  %s2 = inlined_call_operand.hbm [shape: f32[160,96], index: 2, kind: input, shape index: {}]
  %s3 = inlined_call_operand.hbm [shape: f32[8,96], index: 3, kind: input, shape index: {}]
  %s4 = inlined_call_operand.hbm [shape: f32[16,32], index: 4, kind: output, shape index: {}]
  %s5 = sld [smem:[#allocation0]]
  $region42: #{tpu_custom_call.1} parent=0
    _
  %s7 = ssub.s32 1, %s5
  %s8 = scalar_select 0, %s7, %s5
  $region1: #{tpu_custom_call.1} parent=0
    #allocation2 [shape = 'u8[8192]{0}', space=vmem, size = 0x2000, scoped, tag = 'input window, operand 0, single buffered']
    #allocation3 [shape = 's32[1]{0}', space=sflag, size = 0x4, scoped, tag = 'scoped memory for tpu_custom_call.1']
    #allocation4 [shape = 's32[1]{0}', space=sflag, size = 0x4, scoped, tag = 'scoped memory for tpu_custom_call.1']
    #allocation5 [shape = 'u8[8192]{0}', space=vmem, size = 0x2000, scoped, tag = 'input window, operand 1, single buffered']
    #allocation6 [shape = 's32[1]{0}', space=sflag, size = 0x4, scoped, tag = 'scoped memory for tpu_custom_call.1']
    #allocation7 [shape = 'u8[81920]{0}', space=vmem, size = 0x14000, scoped, tag = 'input window, operand 2, single buffered']
    #allocation8 [shape = 'u8[4096]{0}', space=vmem, size = 0x1000, scoped, tag = 'input window, operand 3, single buffered']
    #allocation9 [shape = 's32[1]{0}', space=sflag, size = 0x4, scoped, tag = 'scoped memory for tpu_custom_call.1']
    #allocation10 [shape = 'u8[8192]{0}', space=vmem, size = 0x2000, scoped, tag = 'output window, operand 0, single buffered']
    %9 = vsyncpa [#allocation3], 0
    %10 = vsyncpa [#allocation6], 0
    %11 = vsyncpa [#allocation9], 0
    %12 = vsyncpa [#allocation4], 0
    // Predicated region
    $region2: #{tpu_custom_call.1} parent=1 // pred_check
      _
    $region3: #{tpu_custom_call.1} parent=1 // pred_check_branch
      %14 = sbr.rel (0) target = $region5
    $region4: #{tpu_custom_call.1} parent=1 // pred_region
      %s16 = ssub.s32 256, 256
      %17 = vsyncadd [#allocation3], %s16
      %s18 = sshll.u32 [#allocation2], 4
      %s19 = int_to_ptr.vmem [resolvable:$true] %s18
      %24 = dma.hbm_to_vmem [thread:$0]  %s0, 256, %s19, [#allocation3], 128, 128, 8
    $region5: #{tpu_custom_call.1} parent=1 // pred_fallthru
      _
    // Predicated region
    $region6: #{tpu_custom_call.1} parent=1 // pred_check
      _
    $region7: #{tpu_custom_call.1} parent=1 // pred_check_branch
      %26 = sbr.rel (0) target = $region9
    $region8: #{tpu_custom_call.1} parent=1 // pred_region
      %s28 = ssub.s32 256, 256
      %29 = vsyncadd [#allocation6], %s28
      %s30 = sshll.u32 [#allocation5], 4
      %s31 = int_to_ptr.vmem [resolvable:$true] %s30
      %36 = dma.hbm_to_vmem [thread:$0]  %s1, 256, %s31, [#allocation6], 128, 128, 8
    $region9: #{tpu_custom_call.1} parent=1 // pred_fallthru
      _
    // Predicated region
    $region10: #{tpu_custom_call.1} parent=1 // pred_check
      _
    $region11: #{tpu_custom_call.1} parent=1 // pred_check_branch
      %38 = sbr.rel (0) target = $region13
    $region12: #{tpu_custom_call.1} parent=1 // pred_region
      %s40 = ssub.s32 2560, 2560
      %41 = vsyncadd [#allocation6], %s40
      %s42 = sshll.u32 [#allocation7], 4
      %s43 = int_to_ptr.vmem [resolvable:$true] %s42
      %48 = dma.hbm_to_vmem [thread:$0]  %s2, 2560, %s43, [#allocation6], 128, 128, 8
    $region13: #{tpu_custom_call.1} parent=1 // pred_fallthru
      _
    // Predicated region
    $region14: #{tpu_custom_call.1} parent=1 // pred_check
      _
    $region15: #{tpu_custom_call.1} parent=1 // pred_check_branch
      %50 = sbr.rel (0) target = $region17
    $region16: #{tpu_custom_call.1} parent=1 // pred_region
      %s52 = ssub.s32 128, 128
      %53 = vsyncadd [#allocation9], %s52
      %s55 = sshll.u32 [#allocation8], 4
      %s56 = int_to_ptr.vmem [resolvable:$true] %s55
      %58 = dma.hbm_to_vmem [thread:$0]  %s3, 128, %s56, [#allocation9]
    $region17: #{tpu_custom_call.1} parent=1 // pred_fallthru
      _
    // Predicated region
    $region18: #{tpu_custom_call.1} parent=1 // pred_check
      _
    $region19: #{tpu_custom_call.1} parent=1 // pred_check_branch
      %60 = sbr.rel (0) target = $region21
    $region20: #{tpu_custom_call.1} parent=1 // pred_region
      %61 = dma.done [#allocation3], 256
    $region21: #{tpu_custom_call.1} parent=1 // pred_fallthru
      _
    // Predicated region
    $region22: #{tpu_custom_call.1} parent=1 // pred_check
      _
    $region23: #{tpu_custom_call.1} parent=1 // pred_check_branch
      %63 = sbr.rel (0) target = $region25
    $region24: #{tpu_custom_call.1} parent=1 // pred_region
      %64 = dma.done [#allocation6], 256
    $region25: #{tpu_custom_call.1} parent=1 // pred_fallthru
      _
    // Predicated region
    $region26: #{tpu_custom_call.1} parent=1 // pred_check
      _
    $region27: #{tpu_custom_call.1} parent=1 // pred_check_branch
      %66 = sbr.rel (0) target = $region29
    $region28: #{tpu_custom_call.1} parent=1 // pred_region
      %67 = dma.done [#allocation6], 2560
    $region29: #{tpu_custom_call.1} parent=1 // pred_fallthru
      _
    // Predicated region
    $region30: #{tpu_custom_call.1} parent=1 // pred_check
      _
    $region31: #{tpu_custom_call.1} parent=1 // pred_check_branch
      %69 = sbr.rel (0) target = $region33
    $region32: #{tpu_custom_call.1} parent=1 // pred_region
      %70 = dma.done [#allocation9], 128
    $region33: #{tpu_custom_call.1} parent=1 // pred_fallthru
      _
    %v71 = vld [vmem:[#allocation2] sm:$0xff]
    %v72 = vld [vmem:[#allocation2 + $0x8] sm:$0xff]
    %v73 = vld [vmem:[#allocation5] sm:$0xff]
    %v74 = vld [vmem:[#allocation5 + $0x8] sm:$0xff]
    %v75 = vld [vmem:[#allocation8] sm:$0x1]
    %v76 = vld [vmem:[#allocation8 + $0x1] sm:$0x1]
    %v77 = vld [vmem:[#allocation8 + $0x2] sm:$0x1]
    %v78 = vld [vmem:[#allocation8 + $0x3] sm:$0x1]
    %v79 = vld [vmem:[#allocation8 + $0x4] sm:$0x1]
    %v80 = vld [vmem:[#allocation8 + $0x5] sm:$0x1]
    %v81 = vld [vmem:[#allocation8 + $0x6] sm:$0x1]
    %v82 = vld [vmem:[#allocation8 + $0x7] sm:$0x1]
    %vm83 = vcmask 261120
    %v84 = vsel %vm83, %v71, 0.0
    %85 = vadd.xlane.f32.xlu0 %v84
    %v86 = vpop.xlane.xlu0 %85
    %v87 = vsel %vm83, %v72, 0.0
    %88 = vadd.xlane.f32.xlu0 %v87
    %v89 = vpop.xlane.xlu0 %88
    %v90 = vrcp.pop 32.0
    %v91 = vmul.f32 %v86, %v90
    %v92 = vmul.f32 %v89, %v90
    %v93 = vsub.f32 %v71, %v91
    %v94 = vsub.f32 %v72, %v92
    %v95 = vmul.f32 %v93, %v93
    %v96 = vmul.f32 %v94, %v94
    %v97 = vsel %vm83, %v95, 0.0
    %98 = vadd.xlane.f32.xlu0 %v97
    %v99 = vpop.xlane.xlu0 %98
    %v100 = vsel %vm83, %v96, 0.0
    %101 = vadd.xlane.f32.xlu0 %v100
    %v102 = vpop.xlane.xlu0 %101
    %v103 = vmul.f32 %v99, %v90
    %v104 = vmul.f32 %v102, %v90
    %v105 = vadd.f32 %v103, 1e-06
    %v106 = vadd.f32 %v104, 1e-06
    %v107 = vrsqrt.pop %v105
    %v108 = vrsqrt.pop %v106
    %v109 = vmul.f32 %v93, %v107
    %v110 = vmul.f32 %v94, %v108
    %v111 = vlaneseq
    %v112 = vshrl.u32 %v111, 7
    %v113 = vsub.s32 0, %v112
    %v114 = vrot.slane %v75, %v113
    %v115 = vmul.f32 %v109, %v114
    %v116 = vmul.f32 %v110, %v114
    %v117 = vlaneseq
    %v118 = vshrl.u32 %v117, 7
    %v119 = vsub.s32 0, %v118
    %v120 = vrot.slane %v76, %v119
    %v121 = vadd.f32 %v115, %v120
    %v122 = vadd.f32 %v116, %v120
    %v123 = vld [vmem:[#allocation7] sm:$0xff]
    %v124 = vld [vmem:[#allocation7 + $0x8] sm:$0xff]
    %v125 = vld [vmem:[#allocation7 + $0x10] sm:$0xff]
    %v126 = vld [vmem:[#allocation7 + $0x18] sm:$0xff]
    %v127 = vlaneseq
    %v128 = vshrl.u32 %v127, 7
    %v129 = vsub.s32 0, %v128
    %v130 = vrot.slane %v79, %v129
    %v132 = vsel %vm83, %v121, 0
    %v135 = vsel %vm83, %v122, 0
    %137 = vmatprep.subr.mxu0 0.0
    %138 = vmatpush1.msra.mxu0 0.0
    %139 = vmatprep.subr.mxu0 0.0
    %140 = vmatpush1.msra.mxu0 0.0
    %141 = vmatprep.subr.mxu0 0.0
    %142 = vmatpush1.msra.mxu0 0.0
    %143 = vmatprep.subr.mxu0 0.0
    %144 = vmatpush1.msra.mxu0 0.0
    %145 = vmatprep.subr.mxu0 0.0
    %146 = vmatpush1.msra.mxu0 0.0
    %147 = vmatprep.subr.mxu0 0.0
    %148 = vmatpush1.msra.mxu0 0.0
    %149 = vmatprep.subr.mxu0 0.0
    %150 = vmatpush1.msra.mxu0 0.0
    %151 = vmatprep.subr.mxu0 0.0
    %152 = vmatpush1.msra.mxu0 0.0
    %153 = vmatprep.subr.mxu0 0.0
    %154 = vmatpush1.msra.mxu0 0.0
    %155 = vmatprep.subr.mxu0 0.0
    %156 = vmatpush1.msra.mxu0 0.0
    %157 = vmatprep.subr.mxu0 0.0
    %158 = vmatpush1.msra.mxu0 0.0
    %159 = vmatprep.subr.mxu0 0.0
    %160 = vmatpush1.msra.mxu0 0.0
    %161 = vmatprep.subr.mxu0 0.0
    %162 = vmatpush1.msra.mxu0 %v126
    %163 = vmatprep.subr.mxu0 0.0
    %164 = vmatpush1.msra.mxu0 %v125
    %165 = vmatprep.subr.mxu0 0.0
    %166 = vmatpush1.msra.mxu0 %v124
    %167 = vmatprep.subr.mxu0 0.0
    %168 = vmatpush1.msra.mxu0 %v123
    %169 = vmatprep.subr.mxu0 0.0
    %170 = vmatpush2.msra.mxu0 0.0
    %171 = vmatprep.subr.mxu0 0.0
    %172 = vmatpush2.msra.mxu0 0.0
    %173 = vmatprep.subr.mxu0 0.0
    %174 = vmatpush2.msra.mxu0 0.0
    %175 = vmatprep.subr.mxu0 0.0
    %176 = vmatpush2.msra.mxu0 0.0
    %177 = vmatprep.subr.mxu0 0.0
    %178 = vmatpush2.msra.mxu0 0.0
    %179 = vmatprep.subr.mxu0 0.0
    %180 = vmatpush2.msra.mxu0 0.0
    %181 = vmatprep.subr.mxu0 0.0
    %182 = vmatpush2.msra.mxu0 0.0
    %183 = vmatprep.subr.mxu0 0.0
    %184 = vmatpush2.msra.mxu0 0.0
    %185 = vmatprep.subr.mxu0 0.0
    %186 = vmatpush2.msra.mxu0 0.0
    %187 = vmatprep.subr.mxu0 0.0
    %188 = vmatpush2.msra.mxu0 0.0
    %189 = vmatprep.subr.mxu0 0.0
    %190 = vmatpush2.msra.mxu0 0.0
    %191 = vmatprep.subr.mxu0 0.0
    %192 = vmatpush2.msra.mxu0 0.0
    %193 = vmatprep.subr.mxu0 0.0
    %194 = vmatpush2.msra.mxu0 0.0
    %195 = vmatprep.subr.mxu0 0.0
    %196 = vmatpush2.msra.mxu0 0.0
    %197 = vmatprep.subr.mxu0 0.0
    %198 = vmatpush2.msra.mxu0 0.0
    %199 = vmatprep.subr.mxu0 0.0
    %200 = vmatpush2.msra.mxu0 0.0
    %201 = vmatprep.mubr.f32.mxu0 0.0
    %202 = vmatmul.mubr.f32.gmra.mxu0 %v132
    %v203 = vpop.f32.mrf.mxu0
    %v204 = vadd.f32 %v130, %v203
    %v205 = vpop.f32.mrf.mxu0
    %206 = vmatprep.mubr.f32.mxu0 0.0
    %207 = vmatmul.mubr.f32.gmra.mxu0 %v135
    %v208 = vpop.f32.mrf.mxu0
    %v209 = vadd.f32 %v130, %v208
    %v210 = vpop.f32.mrf.mxu0
    %211 = vdwg.mxu0
    %v212 = vmul.f32 %v204, 0.35355338
    %v213 = vmul.f32 %v209, 0.35355338
    %216 = vrot.lane.b32.xlu0 %v204, 96
    %v217 = vpop.permute.xlu0 %216
    %218 = vrot.lane.b32.xlu0 %v209, 96
    %v219 = vpop.permute.xlu0 %218
    %vm220 = vcmask 64512
    %v222 = vsel %vm220, %v212, 0
    %v225 = vsel %vm220, %v213, 0
    %v227 = vsel %vm220, %v217, 0
    %v229 = vsel %vm220, %v219, 0
    %231 = vmatprep.subr.mxu0 0.0
    %232 = vmatpush1.xpose.msra.mxu0 0.0
    %233 = vmatprep.subr.mxu0 0.0
    %234 = vmatpush1.xpose.msra.mxu0 0.0
    %235 = vmatprep.subr.mxu0 0.0
    %236 = vmatpush1.xpose.msra.mxu0 0.0
    %237 = vmatprep.subr.mxu0 0.0
    %238 = vmatpush1.xpose.msra.mxu0 0.0
    %239 = vmatprep.subr.mxu0 0.0
    %240 = vmatpush1.xpose.msra.mxu0 0.0
    %241 = vmatprep.subr.mxu0 0.0
    %242 = vmatpush1.xpose.msra.mxu0 0.0
    %243 = vmatprep.subr.mxu0 0.0
    %244 = vmatpush1.xpose.msra.mxu0 0.0
    %245 = vmatprep.subr.mxu0 0.0
    %246 = vmatpush1.xpose.msra.mxu0 0.0
    %247 = vmatprep.subr.mxu0 0.0
    %248 = vmatpush1.xpose.msra.mxu0 0.0
    %249 = vmatprep.subr.mxu0 0.0
    %250 = vmatpush1.xpose.msra.mxu0 0.0
    %251 = vmatprep.subr.mxu0 0.0
    %252 = vmatpush1.xpose.msra.mxu0 0.0
    %253 = vmatprep.subr.mxu0 0.0
    %254 = vmatpush1.xpose.msra.mxu0 0.0
    %255 = vmatprep.subr.mxu0 0.0
    %256 = vmatpush1.xpose.msra.mxu0 0.0
    %257 = vmatprep.subr.mxu0 0.0
    %258 = vmatpush1.xpose.msra.mxu0 0.0
    %259 = vmatprep.subr.mxu0 0.0
    %260 = vmatpush1.xpose.msra.mxu0 %v229
    %261 = vmatprep.subr.mxu0 0.0
    %262 = vmatpush1.xpose.msra.mxu0 %v227
    %263 = vmatprep.subr.mxu0 0.0
    %264 = vmatpush2.xpose.msra.mxu0 0.0
    %265 = vmatprep.subr.mxu0 0.0
    %266 = vmatpush2.xpose.msra.mxu0 0.0
    %267 = vmatprep.subr.mxu0 0.0
    %268 = vmatpush2.xpose.msra.mxu0 0.0
    %269 = vmatprep.subr.mxu0 0.0
    %270 = vmatpush2.xpose.msra.mxu0 0.0
    %271 = vmatprep.subr.mxu0 0.0
    %272 = vmatpush2.xpose.msra.mxu0 0.0
    %273 = vmatprep.subr.mxu0 0.0
    %274 = vmatpush2.xpose.msra.mxu0 0.0
    %275 = vmatprep.subr.mxu0 0.0
    %276 = vmatpush2.xpose.msra.mxu0 0.0
    %277 = vmatprep.subr.mxu0 0.0
    %278 = vmatpush2.xpose.msra.mxu0 0.0
    %279 = vmatprep.subr.mxu0 0.0
    %280 = vmatpush2.xpose.msra.mxu0 0.0
    %281 = vmatprep.subr.mxu0 0.0
    %282 = vmatpush2.xpose.msra.mxu0 0.0
    %283 = vmatprep.subr.mxu0 0.0
    %284 = vmatpush2.xpose.msra.mxu0 0.0
    %285 = vmatprep.subr.mxu0 0.0
    %286 = vmatpush2.xpose.msra.mxu0 0.0
    %287 = vmatprep.subr.mxu0 0.0
    %288 = vmatpush2.xpose.msra.mxu0 0.0
    %289 = vmatprep.subr.mxu0 0.0
    %290 = vmatpush2.xpose.msra.mxu0 0.0
    %291 = vmatprep.subr.mxu0 0.0
    %292 = vmatpush2.xpose.msra.mxu0 0.0
    %293 = vmatprep.subr.mxu0 0.0
    %294 = vmatpush2.xpose.msra.mxu0 0.0
    %295 = vmatprep.mubr.f32.mxu0 0.0
    %296 = vmatmul.mubr.f32.gmra.mxu0 %v222
    %v297 = vpop.f32.mrf.mxu0
    %v298 = vadd.f32 %v73, %v297
    %v299 = vpop.f32.mrf.mxu0
    %300 = vmatprep.mubr.f32.mxu0 0.0
    %301 = vmatmul.mubr.f32.gmra.mxu0 %v225
    %v302 = vpop.f32.mrf.mxu0
    %v303 = vadd.f32 %v74, %v302
    %v304 = vpop.f32.mrf.mxu0
    %305 = vdwg.mxu0
    %vm306 = vcmask 130048
    %v307 = vsel %vm306, %v298, -inf
    %308 = vmax.xlane.f32.xlu0 %v307
    %v309 = vpop.xlane.xlu0 %308
    %v310 = vsel %vm306, %v303, -inf
    %311 = vmax.xlane.f32.xlu0 %v310
    %v312 = vpop.xlane.xlu0 %311
    %v313 = vsub.f32 %v298, %v309
    %v314 = vsub.f32 %v303, %v312
    %v315 = vmul.f32 %v313, 1.442695
    %v316 = vpow.pop %v315
    %v317 = vmul.f32 %v314, 1.442695
    %v318 = vpow.pop %v317
    %v319 = vsel %vm306, %v316, 0.0
    %320 = vadd.xlane.f32.xlu0 %v319
    %v321 = vpop.xlane.xlu0 %320
    %v322 = vsel %vm306, %v318, 0.0
    %323 = vadd.xlane.f32.xlu0 %v322
    %v324 = vpop.xlane.xlu0 %323
    %v325 = vrcp.pop %v321
    %v326 = vrcp.pop %v324
    %v327 = vmul.f32 %v316, %v325
    %v328 = vmul.f32 %v318, %v326
    %329 = vrot.lane.b32.xlu0 %v204, 64
    %v330 = vpop.permute.xlu0 %329
    %331 = vrot.lane.b32.xlu0 %v209, 64
    %v332 = vpop.permute.xlu0 %331
    %v336 = vsel %vm306, %v327, 0
    %v339 = vsel %vm306, %v328, 0
    %341 = vmatprep.subr.mxu0 0.0
    %342 = vmatpush1.msra.mxu0 0.0
    %343 = vmatprep.subr.mxu0 0.0
    %344 = vmatpush1.msra.mxu0 0.0
    %345 = vmatprep.subr.mxu0 0.0
    %346 = vmatpush1.msra.mxu0 0.0
    %347 = vmatprep.subr.mxu0 0.0
    %348 = vmatpush1.msra.mxu0 0.0
    %349 = vmatprep.subr.mxu0 0.0
    %350 = vmatpush1.msra.mxu0 0.0
    %351 = vmatprep.subr.mxu0 0.0
    %352 = vmatpush1.msra.mxu0 0.0
    %353 = vmatprep.subr.mxu0 0.0
    %354 = vmatpush1.msra.mxu0 0.0
    %355 = vmatprep.subr.mxu0 0.0
    %356 = vmatpush1.msra.mxu0 0.0
    %357 = vmatprep.subr.mxu0 0.0
    %358 = vmatpush1.msra.mxu0 0.0
    %359 = vmatprep.subr.mxu0 0.0
    %360 = vmatpush1.msra.mxu0 0.0
    %361 = vmatprep.subr.mxu0 0.0
    %362 = vmatpush1.msra.mxu0 0.0
    %363 = vmatprep.subr.mxu0 0.0
    %364 = vmatpush1.msra.mxu0 0.0
    %365 = vmatprep.subr.mxu0 0.0
    %366 = vmatpush1.msra.mxu0 0.0
    %367 = vmatprep.subr.mxu0 0.0
    %368 = vmatpush1.msra.mxu0 0.0
    %369 = vmatprep.subr.mxu0 0.0
    %370 = vmatpush1.msra.mxu0 %v332
    %371 = vmatprep.subr.mxu0 0.0
    %372 = vmatpush1.msra.mxu0 %v330
    %373 = vmatprep.subr.mxu0 0.0
    %374 = vmatpush2.msra.mxu0 0.0
    %375 = vmatprep.subr.mxu0 0.0
    %376 = vmatpush2.msra.mxu0 0.0
    %377 = vmatprep.subr.mxu0 0.0
    %378 = vmatpush2.msra.mxu0 0.0
    %379 = vmatprep.subr.mxu0 0.0
    %380 = vmatpush2.msra.mxu0 0.0
    %381 = vmatprep.subr.mxu0 0.0
    %382 = vmatpush2.msra.mxu0 0.0
    %383 = vmatprep.subr.mxu0 0.0
    %384 = vmatpush2.msra.mxu0 0.0
    %385 = vmatprep.subr.mxu0 0.0
    %386 = vmatpush2.msra.mxu0 0.0
    %387 = vmatprep.subr.mxu0 0.0
    %388 = vmatpush2.msra.mxu0 0.0
    %389 = vmatprep.subr.mxu0 0.0
    %390 = vmatpush2.msra.mxu0 0.0
    %391 = vmatprep.subr.mxu0 0.0
    %392 = vmatpush2.msra.mxu0 0.0
    %393 = vmatprep.subr.mxu0 0.0
    %394 = vmatpush2.msra.mxu0 0.0
    %395 = vmatprep.subr.mxu0 0.0
    %396 = vmatpush2.msra.mxu0 0.0
    %397 = vmatprep.subr.mxu0 0.0
    %398 = vmatpush2.msra.mxu0 0.0
    %399 = vmatprep.subr.mxu0 0.0
    %400 = vmatpush2.msra.mxu0 0.0
    %401 = vmatprep.subr.mxu0 0.0
    %402 = vmatpush2.msra.mxu0 0.0
    %403 = vmatprep.subr.mxu0 0.0
    %404 = vmatpush2.msra.mxu0 0.0
    %405 = vmatprep.mubr.f32.mxu0 0.0
    %406 = vmatmul.mubr.f32.gmra.mxu0 %v336
    %v407 = vpop.f32.mrf.mxu0
    %v408 = vadd.f32 0.0, %v407
    %v409 = vpop.f32.mrf.mxu0
    %410 = vmatprep.mubr.f32.mxu0 0.0
    %411 = vmatmul.mubr.f32.gmra.mxu0 %v339
    %v412 = vpop.f32.mrf.mxu0
    %v413 = vadd.f32 0.0, %v412
    %v414 = vpop.f32.mrf.mxu0
    %415 = vdwg.mxu0
    %v416 = vld [vmem:[#allocation7 + $0x20] sm:$0xff]
    %417 = vrot.lane.b32.xlu0 %v212, 120
    %v418 = vpop.permute.xlu0 %417
    %419 = vrot.lane.b32.xlu0 %v213, 120
    %v420 = vpop.permute.xlu0 %419
    %421 = vrot.lane.b32.xlu0 %v204, 88
    %v422 = vpop.permute.xlu0 %421
    %423 = vrot.lane.b32.xlu0 %v209, 88
    %v424 = vpop.permute.xlu0 %423
    %v425 = vsel %vm220, %v418, 0
    %v427 = vsel %vm220, %v420, 0
    %v429 = vsel %vm220, %v422, 0
    %v431 = vsel %vm220, %v424, 0
    %433 = vmatprep.subr.mxu0 0.0
    %434 = vmatpush1.xpose.msra.mxu0 0.0
    %435 = vmatprep.subr.mxu0 0.0
    %436 = vmatpush1.xpose.msra.mxu0 0.0
    %437 = vmatprep.subr.mxu0 0.0
    %438 = vmatpush1.xpose.msra.mxu0 0.0
    %439 = vmatprep.subr.mxu0 0.0
    %440 = vmatpush1.xpose.msra.mxu0 0.0
    %441 = vmatprep.subr.mxu0 0.0
    %442 = vmatpush1.xpose.msra.mxu0 0.0
    %443 = vmatprep.subr.mxu0 0.0
    %444 = vmatpush1.xpose.msra.mxu0 0.0
    %445 = vmatprep.subr.mxu0 0.0
    %446 = vmatpush1.xpose.msra.mxu0 0.0
    %447 = vmatprep.subr.mxu0 0.0
    %448 = vmatpush1.xpose.msra.mxu0 0.0
    %449 = vmatprep.subr.mxu0 0.0
    %450 = vmatpush1.xpose.msra.mxu0 0.0
    %451 = vmatprep.subr.mxu0 0.0
    %452 = vmatpush1.xpose.msra.mxu0 0.0
    %453 = vmatprep.subr.mxu0 0.0
    %454 = vmatpush1.xpose.msra.mxu0 0.0
    %455 = vmatprep.subr.mxu0 0.0
    %456 = vmatpush1.xpose.msra.mxu0 0.0
    %457 = vmatprep.subr.mxu0 0.0
    %458 = vmatpush1.xpose.msra.mxu0 0.0
    %459 = vmatprep.subr.mxu0 0.0
    %460 = vmatpush1.xpose.msra.mxu0 0.0
    %461 = vmatprep.subr.mxu0 0.0
    %462 = vmatpush1.xpose.msra.mxu0 %v431
    %463 = vmatprep.subr.mxu0 0.0
    %464 = vmatpush1.xpose.msra.mxu0 %v429
    %465 = vmatprep.subr.mxu0 0.0
    %466 = vmatpush2.xpose.msra.mxu0 0.0
    %467 = vmatprep.subr.mxu0 0.0
    %468 = vmatpush2.xpose.msra.mxu0 0.0
    %469 = vmatprep.subr.mxu0 0.0
    %470 = vmatpush2.xpose.msra.mxu0 0.0
    %471 = vmatprep.subr.mxu0 0.0
    %472 = vmatpush2.xpose.msra.mxu0 0.0
    %473 = vmatprep.subr.mxu0 0.0
    %474 = vmatpush2.xpose.msra.mxu0 0.0
    %475 = vmatprep.subr.mxu0 0.0
    %476 = vmatpush2.xpose.msra.mxu0 0.0
    %477 = vmatprep.subr.mxu0 0.0
    %478 = vmatpush2.xpose.msra.mxu0 0.0
    %479 = vmatprep.subr.mxu0 0.0
    %480 = vmatpush2.xpose.msra.mxu0 0.0
    %481 = vmatprep.subr.mxu0 0.0
    %482 = vmatpush2.xpose.msra.mxu0 0.0
    %483 = vmatprep.subr.mxu0 0.0
    %484 = vmatpush2.xpose.msra.mxu0 0.0
    %485 = vmatprep.subr.mxu0 0.0
    %486 = vmatpush2.xpose.msra.mxu0 0.0
    %487 = vmatprep.subr.mxu0 0.0
    %488 = vmatpush2.xpose.msra.mxu0 0.0
    %489 = vmatprep.subr.mxu0 0.0
    %490 = vmatpush2.xpose.msra.mxu0 0.0
    %491 = vmatprep.subr.mxu0 0.0
    %492 = vmatpush2.xpose.msra.mxu0 0.0
    %493 = vmatprep.subr.mxu0 0.0
    %494 = vmatpush2.xpose.msra.mxu0 0.0
    %495 = vmatprep.subr.mxu0 0.0
    %496 = vmatpush2.xpose.msra.mxu0 0.0
    %497 = vmatprep.mubr.f32.mxu0 0.0
    %498 = vmatmul.mubr.f32.gmra.mxu0 %v425
    %v499 = vpop.f32.mrf.mxu0
    %v500 = vadd.f32 %v73, %v499
    %v501 = vpop.f32.mrf.mxu0
    %502 = vmatprep.mubr.f32.mxu0 0.0
    %503 = vmatmul.mubr.f32.gmra.mxu0 %v427
    %v504 = vpop.f32.mrf.mxu0
    %v505 = vadd.f32 %v74, %v504
    %v506 = vpop.f32.mrf.mxu0
    %507 = vdwg.mxu0
    %v508 = vsel %vm306, %v500, -inf
    %509 = vmax.xlane.f32.xlu0 %v508
    %v510 = vpop.xlane.xlu0 %509
    %v511 = vsel %vm306, %v505, -inf
    %512 = vmax.xlane.f32.xlu0 %v511
    %v513 = vpop.xlane.xlu0 %512
    %v514 = vsub.f32 %v500, %v510
    %v515 = vsub.f32 %v505, %v513
    %v516 = vmul.f32 %v514, 1.442695
    %v517 = vpow.pop %v516
    %v518 = vmul.f32 %v515, 1.442695
    %v519 = vpow.pop %v518
    %v520 = vsel %vm306, %v517, 0.0
    %521 = vadd.xlane.f32.xlu0 %v520
    %v522 = vpop.xlane.xlu0 %521
    %v523 = vsel %vm306, %v519, 0.0
    %524 = vadd.xlane.f32.xlu0 %v523
    %v525 = vpop.xlane.xlu0 %524
    %v526 = vrcp.pop %v522
    %v527 = vrcp.pop %v525
    %v528 = vmul.f32 %v517, %v526
    %v529 = vmul.f32 %v519, %v527
    %530 = vrot.lane.b32.xlu0 %v204, 56
    %v531 = vpop.permute.xlu0 %530
    %532 = vrot.lane.b32.xlu0 %v209, 56
    %v533 = vpop.permute.xlu0 %532
    %v537 = vsel %vm306, %v528, 0
    %v540 = vsel %vm306, %v529, 0
    %542 = vmatprep.subr.mxu0 0.0
    %543 = vmatpush1.msra.mxu0 0.0
    %544 = vmatprep.subr.mxu0 0.0
    %545 = vmatpush1.msra.mxu0 0.0
    %546 = vmatprep.subr.mxu0 0.0
    %547 = vmatpush1.msra.mxu0 0.0
    %548 = vmatprep.subr.mxu0 0.0
    %549 = vmatpush1.msra.mxu0 0.0
    %550 = vmatprep.subr.mxu0 0.0
    %551 = vmatpush1.msra.mxu0 0.0
    %552 = vmatprep.subr.mxu0 0.0
    %553 = vmatpush1.msra.mxu0 0.0
    %554 = vmatprep.subr.mxu0 0.0
    %555 = vmatpush1.msra.mxu0 0.0
    %556 = vmatprep.subr.mxu0 0.0
    %557 = vmatpush1.msra.mxu0 0.0
    %558 = vmatprep.subr.mxu0 0.0
    %559 = vmatpush1.msra.mxu0 0.0
    %560 = vmatprep.subr.mxu0 0.0
    %561 = vmatpush1.msra.mxu0 0.0
    %562 = vmatprep.subr.mxu0 0.0
    %563 = vmatpush1.msra.mxu0 0.0
    %564 = vmatprep.subr.mxu0 0.0
    %565 = vmatpush1.msra.mxu0 0.0
    %566 = vmatprep.subr.mxu0 0.0
    %567 = vmatpush1.msra.mxu0 0.0
    %568 = vmatprep.subr.mxu0 0.0
    %569 = vmatpush1.msra.mxu0 0.0
    %570 = vmatprep.subr.mxu0 0.0
    %571 = vmatpush1.msra.mxu0 %v533
    %572 = vmatprep.subr.mxu0 0.0
    %573 = vmatpush1.msra.mxu0 %v531
    %574 = vmatprep.subr.mxu0 0.0
    %575 = vmatpush2.msra.mxu0 0.0
    %576 = vmatprep.subr.mxu0 0.0
    %577 = vmatpush2.msra.mxu0 0.0
    %578 = vmatprep.subr.mxu0 0.0
    %579 = vmatpush2.msra.mxu0 0.0
    %580 = vmatprep.subr.mxu0 0.0
    %581 = vmatpush2.msra.mxu0 0.0
    %582 = vmatprep.subr.mxu0 0.0
    %583 = vmatpush2.msra.mxu0 0.0
    %584 = vmatprep.subr.mxu0 0.0
    %585 = vmatpush2.msra.mxu0 0.0
    %586 = vmatprep.subr.mxu0 0.0
    %587 = vmatpush2.msra.mxu0 0.0
    %588 = vmatprep.subr.mxu0 0.0
    %589 = vmatpush2.msra.mxu0 0.0
    %590 = vmatprep.subr.mxu0 0.0
    %591 = vmatpush2.msra.mxu0 0.0
    %592 = vmatprep.subr.mxu0 0.0
    %593 = vmatpush2.msra.mxu0 0.0
    %594 = vmatprep.subr.mxu0 0.0
    %595 = vmatpush2.msra.mxu0 0.0
    %596 = vmatprep.subr.mxu0 0.0
    %597 = vmatpush2.msra.mxu0 0.0
    %598 = vmatprep.subr.mxu0 0.0
    %599 = vmatpush2.msra.mxu0 0.0
    %600 = vmatprep.subr.mxu0 0.0
    %601 = vmatpush2.msra.mxu0 0.0
    %602 = vmatprep.subr.mxu0 0.0
    %603 = vmatpush2.msra.mxu0 0.0
    %604 = vmatprep.subr.mxu0 0.0
    %605 = vmatpush2.msra.mxu0 0.0
    %606 = vmatprep.mubr.f32.mxu0 0.0
    %607 = vmatmul.mubr.f32.gmra.mxu0 %v537
    %v608 = vpop.f32.mrf.mxu0
    %v609 = vadd.f32 0.0, %v608
    %v610 = vpop.f32.mrf.mxu0
    %611 = vmatprep.mubr.f32.mxu0 0.0
    %612 = vmatmul.mubr.f32.gmra.mxu0 %v540
    %v613 = vpop.f32.mrf.mxu0
    %v614 = vadd.f32 0.0, %v613
    %v615 = vpop.f32.mrf.mxu0
    %616 = vdwg.mxu0
    %v617 = vld [vmem:[#allocation7 + $0x28] sm:$0xff]
    %v619 = vsel %vm220, %v609, 0
    %v622 = vsel %vm220, %v614, 0
    %624 = vmatprep.subr.mxu0 0.0
    %625 = vmatpush1.msra.mxu0 0.0
    %626 = vmatprep.subr.mxu0 0.0
    %627 = vmatpush1.msra.mxu0 0.0
    %628 = vmatprep.subr.mxu0 0.0
    %629 = vmatpush1.msra.mxu0 0.0
    %630 = vmatprep.subr.mxu0 0.0
    %631 = vmatpush1.msra.mxu0 0.0
    %632 = vmatprep.subr.mxu0 0.0
    %633 = vmatpush1.msra.mxu0 0.0
    %634 = vmatprep.subr.mxu0 0.0
    %635 = vmatpush1.msra.mxu0 0.0
    %636 = vmatprep.subr.mxu0 0.0
    %637 = vmatpush1.msra.mxu0 0.0
    %638 = vmatprep.subr.mxu0 0.0
    %639 = vmatpush1.msra.mxu0 0.0
    %640 = vmatprep.subr.mxu0 0.0
    %641 = vmatpush1.msra.mxu0 0.0
    %642 = vmatprep.subr.mxu0 0.0
    %643 = vmatpush1.msra.mxu0 0.0
    %644 = vmatprep.subr.mxu0 0.0
    %645 = vmatpush1.msra.mxu0 0.0
    %646 = vmatprep.subr.mxu0 0.0
    %647 = vmatpush1.msra.mxu0 0.0
    %648 = vmatprep.subr.mxu0 0.0
    %649 = vmatpush1.msra.mxu0 0.0
    %650 = vmatprep.subr.mxu0 0.0
    %651 = vmatpush1.msra.mxu0 0.0
    %652 = vmatprep.subr.mxu0 0.0
    %653 = vmatpush1.msra.mxu0 0.0
    %654 = vmatprep.subr.mxu0 0.0
    %655 = vmatpush1.msra.mxu0 %v617
    %656 = vmatprep.subr.mxu0 0.0
    %657 = vmatpush2.msra.mxu0 0.0
    %658 = vmatprep.subr.mxu0 0.0
    %659 = vmatpush2.msra.mxu0 0.0
    %660 = vmatprep.subr.mxu0 0.0
    %661 = vmatpush2.msra.mxu0 0.0
    %662 = vmatprep.subr.mxu0 0.0
    %663 = vmatpush2.msra.mxu0 0.0
    %664 = vmatprep.subr.mxu0 0.0
    %665 = vmatpush2.msra.mxu0 0.0
    %666 = vmatprep.subr.mxu0 0.0
    %667 = vmatpush2.msra.mxu0 0.0
    %668 = vmatprep.subr.mxu0 0.0
    %669 = vmatpush2.msra.mxu0 0.0
    %670 = vmatprep.subr.mxu0 0.0
    %671 = vmatpush2.msra.mxu0 0.0
    %672 = vmatprep.subr.mxu0 0.0
    %673 = vmatpush2.msra.mxu0 0.0
    %674 = vmatprep.subr.mxu0 0.0
    %675 = vmatpush2.msra.mxu0 0.0
    %676 = vmatprep.subr.mxu0 0.0
    %677 = vmatpush2.msra.mxu0 0.0
    %678 = vmatprep.subr.mxu0 0.0
    %679 = vmatpush2.msra.mxu0 0.0
    %680 = vmatprep.subr.mxu0 0.0
    %681 = vmatpush2.msra.mxu0 0.0
    %682 = vmatprep.subr.mxu0 0.0
    %683 = vmatpush2.msra.mxu0 0.0
    %684 = vmatprep.subr.mxu0 0.0
    %685 = vmatpush2.msra.mxu0 0.0
    %686 = vmatprep.subr.mxu0 0.0
    %687 = vmatpush2.msra.mxu0 0.0
    %688 = vmatprep.mubr.f32.mxu0 0.0
    %689 = vmatmul.mubr.f32.gmra.mxu0 %v619
    %v690 = vpop.f32.mrf.mxu0
    %v691 = vadd.f32 0.0, %v690
    %v692 = vpop.f32.mrf.mxu0
    %693 = vmatprep.mubr.f32.mxu0 0.0
    %694 = vmatmul.mubr.f32.gmra.mxu0 %v622
    %v695 = vpop.f32.mrf.mxu0
    %v696 = vadd.f32 0.0, %v695
    %v697 = vpop.f32.mrf.mxu0
    %698 = vdwg.mxu0
    %v700 = vsel %vm220, %v408, 0
    %v703 = vsel %vm220, %v413, 0
    %705 = vmatprep.subr.mxu0 0.0
    %706 = vmatpush1.msra.mxu0 0.0
    %707 = vmatprep.subr.mxu0 0.0
    %708 = vmatpush1.msra.mxu0 0.0
    %709 = vmatprep.subr.mxu0 0.0
    %710 = vmatpush1.msra.mxu0 0.0
    %711 = vmatprep.subr.mxu0 0.0
    %712 = vmatpush1.msra.mxu0 0.0
    %713 = vmatprep.subr.mxu0 0.0
    %714 = vmatpush1.msra.mxu0 0.0
    %715 = vmatprep.subr.mxu0 0.0
    %716 = vmatpush1.msra.mxu0 0.0
    %717 = vmatprep.subr.mxu0 0.0
    %718 = vmatpush1.msra.mxu0 0.0
    %719 = vmatprep.subr.mxu0 0.0
    %720 = vmatpush1.msra.mxu0 0.0
    %721 = vmatprep.subr.mxu0 0.0
    %722 = vmatpush1.msra.mxu0 0.0
    %723 = vmatprep.subr.mxu0 0.0
    %724 = vmatpush1.msra.mxu0 0.0
    %725 = vmatprep.subr.mxu0 0.0
    %726 = vmatpush1.msra.mxu0 0.0
    %727 = vmatprep.subr.mxu0 0.0
    %728 = vmatpush1.msra.mxu0 0.0
    %729 = vmatprep.subr.mxu0 0.0
    %730 = vmatpush1.msra.mxu0 0.0
    %731 = vmatprep.subr.mxu0 0.0
    %732 = vmatpush1.msra.mxu0 0.0
    %733 = vmatprep.subr.mxu0 0.0
    %734 = vmatpush1.msra.mxu0 0.0
    %735 = vmatprep.subr.mxu0 0.0
    %736 = vmatpush1.msra.mxu0 %v416
    %737 = vmatprep.subr.mxu0 0.0
    %738 = vmatpush2.msra.mxu0 0.0
    %739 = vmatprep.subr.mxu0 0.0
    %740 = vmatpush2.msra.mxu0 0.0
    %741 = vmatprep.subr.mxu0 0.0
    %742 = vmatpush2.msra.mxu0 0.0
    %743 = vmatprep.subr.mxu0 0.0
    %744 = vmatpush2.msra.mxu0 0.0
    %745 = vmatprep.subr.mxu0 0.0
    %746 = vmatpush2.msra.mxu0 0.0
    %747 = vmatprep.subr.mxu0 0.0
    %748 = vmatpush2.msra.mxu0 0.0
    %749 = vmatprep.subr.mxu0 0.0
    %750 = vmatpush2.msra.mxu0 0.0
    %751 = vmatprep.subr.mxu0 0.0
    %752 = vmatpush2.msra.mxu0 0.0
    %753 = vmatprep.subr.mxu0 0.0
    %754 = vmatpush2.msra.mxu0 0.0
    %755 = vmatprep.subr.mxu0 0.0
    %756 = vmatpush2.msra.mxu0 0.0
    %757 = vmatprep.subr.mxu0 0.0
    %758 = vmatpush2.msra.mxu0 0.0
    %759 = vmatprep.subr.mxu0 0.0
    %760 = vmatpush2.msra.mxu0 0.0
    %761 = vmatprep.subr.mxu0 0.0
    %762 = vmatpush2.msra.mxu0 0.0
    %763 = vmatprep.subr.mxu0 0.0
    %764 = vmatpush2.msra.mxu0 0.0
    %765 = vmatprep.subr.mxu0 0.0
    %766 = vmatpush2.msra.mxu0 0.0
    %767 = vmatprep.subr.mxu0 0.0
    %768 = vmatpush2.msra.mxu0 0.0
    %769 = vmatprep.mubr.f32.mxu0 0.0
    %770 = vmatmul.mubr.f32.gmra.mxu0 %v700
    %v771 = vpop.f32.mrf.mxu0
    %v772 = vadd.f32 %v691, %v771
    %v773 = vpop.f32.mrf.mxu0
    %774 = vmatprep.mubr.f32.mxu0 0.0
    %775 = vmatmul.mubr.f32.gmra.mxu0 %v703
    %v776 = vpop.f32.mrf.mxu0
    %v777 = vadd.f32 %v696, %v776
    %v778 = vpop.f32.mrf.mxu0
    %779 = vdwg.mxu0
    %780 = vrot.lane.b32.xlu0 %v212, 112
    %v781 = vpop.permute.xlu0 %780
    %782 = vrot.lane.b32.xlu0 %v213, 112
    %v783 = vpop.permute.xlu0 %782
    %784 = vrot.lane.b32.xlu0 %v204, 80
    %v785 = vpop.permute.xlu0 %784
    %786 = vrot.lane.b32.xlu0 %v209, 80
    %v787 = vpop.permute.xlu0 %786
    %v788 = vsel %vm220, %v781, 0
    %v790 = vsel %vm220, %v783, 0
    %v792 = vsel %vm220, %v785, 0
    %v794 = vsel %vm220, %v787, 0
    %796 = vmatprep.subr.mxu0 0.0
    %797 = vmatpush1.xpose.msra.mxu0 0.0
    %798 = vmatprep.subr.mxu0 0.0
    %799 = vmatpush1.xpose.msra.mxu0 0.0
    %800 = vmatprep.subr.mxu0 0.0
    %801 = vmatpush1.xpose.msra.mxu0 0.0
    %802 = vmatprep.subr.mxu0 0.0
    %803 = vmatpush1.xpose.msra.mxu0 0.0
    %804 = vmatprep.subr.mxu0 0.0
    %805 = vmatpush1.xpose.msra.mxu0 0.0
    %806 = vmatprep.subr.mxu0 0.0
    %807 = vmatpush1.xpose.msra.mxu0 0.0
    %808 = vmatprep.subr.mxu0 0.0
    %809 = vmatpush1.xpose.msra.mxu0 0.0
    %810 = vmatprep.subr.mxu0 0.0
    %811 = vmatpush1.xpose.msra.mxu0 0.0
    %812 = vmatprep.subr.mxu0 0.0
    %813 = vmatpush1.xpose.msra.mxu0 0.0
    %814 = vmatprep.subr.mxu0 0.0
    %815 = vmatpush1.xpose.msra.mxu0 0.0
    %816 = vmatprep.subr.mxu0 0.0
    %817 = vmatpush1.xpose.msra.mxu0 0.0
    %818 = vmatprep.subr.mxu0 0.0
    %819 = vmatpush1.xpose.msra.mxu0 0.0
    %820 = vmatprep.subr.mxu0 0.0
    %821 = vmatpush1.xpose.msra.mxu0 0.0
    %822 = vmatprep.subr.mxu0 0.0
    %823 = vmatpush1.xpose.msra.mxu0 0.0
    %824 = vmatprep.subr.mxu0 0.0
    %825 = vmatpush1.xpose.msra.mxu0 %v794
    %826 = vmatprep.subr.mxu0 0.0
    %827 = vmatpush1.xpose.msra.mxu0 %v792
    %828 = vmatprep.subr.mxu0 0.0
    %829 = vmatpush2.xpose.msra.mxu0 0.0
    %830 = vmatprep.subr.mxu0 0.0
    %831 = vmatpush2.xpose.msra.mxu0 0.0
    %832 = vmatprep.subr.mxu0 0.0
    %833 = vmatpush2.xpose.msra.mxu0 0.0
    %834 = vmatprep.subr.mxu0 0.0
    %835 = vmatpush2.xpose.msra.mxu0 0.0
    %836 = vmatprep.subr.mxu0 0.0
    %837 = vmatpush2.xpose.msra.mxu0 0.0
    %838 = vmatprep.subr.mxu0 0.0
    %839 = vmatpush2.xpose.msra.mxu0 0.0
    %840 = vmatprep.subr.mxu0 0.0
    %841 = vmatpush2.xpose.msra.mxu0 0.0
    %842 = vmatprep.subr.mxu0 0.0
    %843 = vmatpush2.xpose.msra.mxu0 0.0
    %844 = vmatprep.subr.mxu0 0.0
    %845 = vmatpush2.xpose.msra.mxu0 0.0
    %846 = vmatprep.subr.mxu0 0.0
    %847 = vmatpush2.xpose.msra.mxu0 0.0
    %848 = vmatprep.subr.mxu0 0.0
    %849 = vmatpush2.xpose.msra.mxu0 0.0
    %850 = vmatprep.subr.mxu0 0.0
    %851 = vmatpush2.xpose.msra.mxu0 0.0
    %852 = vmatprep.subr.mxu0 0.0
    %853 = vmatpush2.xpose.msra.mxu0 0.0
    %854 = vmatprep.subr.mxu0 0.0
    %855 = vmatpush2.xpose.msra.mxu0 0.0
    %856 = vmatprep.subr.mxu0 0.0
    %857 = vmatpush2.xpose.msra.mxu0 0.0
    %858 = vmatprep.subr.mxu0 0.0
    %859 = vmatpush2.xpose.msra.mxu0 0.0
    %860 = vmatprep.mubr.f32.mxu0 0.0
    %861 = vmatmul.mubr.f32.gmra.mxu0 %v788
    %v862 = vpop.f32.mrf.mxu0
    %v863 = vadd.f32 %v73, %v862
    %v864 = vpop.f32.mrf.mxu0
    %865 = vmatprep.mubr.f32.mxu0 0.0
    %866 = vmatmul.mubr.f32.gmra.mxu0 %v790
    %v867 = vpop.f32.mrf.mxu0
    %v868 = vadd.f32 %v74, %v867
    %v869 = vpop.f32.mrf.mxu0
    %870 = vdwg.mxu0
    %v871 = vsel %vm306, %v863, -inf
    %872 = vmax.xlane.f32.xlu0 %v871
    %v873 = vpop.xlane.xlu0 %872
    %v874 = vsel %vm306, %v868, -inf
    %875 = vmax.xlane.f32.xlu0 %v874
    %v876 = vpop.xlane.xlu0 %875
    %v877 = vsub.f32 %v863, %v873
    %v878 = vsub.f32 %v868, %v876
    %v879 = vmul.f32 %v877, 1.442695
    %v880 = vpow.pop %v879
    %v881 = vmul.f32 %v878, 1.442695
    %v882 = vpow.pop %v881
    %v883 = vsel %vm306, %v880, 0.0
    %884 = vadd.xlane.f32.xlu0 %v883
    %v885 = vpop.xlane.xlu0 %884
    %v886 = vsel %vm306, %v882, 0.0
    %887 = vadd.xlane.f32.xlu0 %v886
    %v888 = vpop.xlane.xlu0 %887
    %v889 = vrcp.pop %v885
    %v890 = vrcp.pop %v888
    %v891 = vmul.f32 %v880, %v889
    %v892 = vmul.f32 %v882, %v890
    %893 = vrot.lane.b32.xlu0 %v204, 48
    %v894 = vpop.permute.xlu0 %893
    %895 = vrot.lane.b32.xlu0 %v209, 48
    %v896 = vpop.permute.xlu0 %895
    %v900 = vsel %vm306, %v891, 0
    %v903 = vsel %vm306, %v892, 0
    %905 = vmatprep.subr.mxu0 0.0
    %906 = vmatpush1.msra.mxu0 0.0
    %907 = vmatprep.subr.mxu0 0.0
    %908 = vmatpush1.msra.mxu0 0.0
    %909 = vmatprep.subr.mxu0 0.0
    %910 = vmatpush1.msra.mxu0 0.0
    %911 = vmatprep.subr.mxu0 0.0
    %912 = vmatpush1.msra.mxu0 0.0
    %913 = vmatprep.subr.mxu0 0.0
    %914 = vmatpush1.msra.mxu0 0.0
    %915 = vmatprep.subr.mxu0 0.0
    %916 = vmatpush1.msra.mxu0 0.0
    %917 = vmatprep.subr.mxu0 0.0
    %918 = vmatpush1.msra.mxu0 0.0
    %919 = vmatprep.subr.mxu0 0.0
    %920 = vmatpush1.msra.mxu0 0.0
    %921 = vmatprep.subr.mxu0 0.0
    %922 = vmatpush1.msra.mxu0 0.0
    %923 = vmatprep.subr.mxu0 0.0
    %924 = vmatpush1.msra.mxu0 0.0
    %925 = vmatprep.subr.mxu0 0.0
    %926 = vmatpush1.msra.mxu0 0.0
    %927 = vmatprep.subr.mxu0 0.0
    %928 = vmatpush1.msra.mxu0 0.0
    %929 = vmatprep.subr.mxu0 0.0
    %930 = vmatpush1.msra.mxu0 0.0
    %931 = vmatprep.subr.mxu0 0.0
    %932 = vmatpush1.msra.mxu0 0.0
    %933 = vmatprep.subr.mxu0 0.0
    %934 = vmatpush1.msra.mxu0 %v896
    %935 = vmatprep.subr.mxu0 0.0
    %936 = vmatpush1.msra.mxu0 %v894
    %937 = vmatprep.subr.mxu0 0.0
    %938 = vmatpush2.msra.mxu0 0.0
    %939 = vmatprep.subr.mxu0 0.0
    %940 = vmatpush2.msra.mxu0 0.0
    %941 = vmatprep.subr.mxu0 0.0
    %942 = vmatpush2.msra.mxu0 0.0
    %943 = vmatprep.subr.mxu0 0.0
    %944 = vmatpush2.msra.mxu0 0.0
    %945 = vmatprep.subr.mxu0 0.0
    %946 = vmatpush2.msra.mxu0 0.0
    %947 = vmatprep.subr.mxu0 0.0
    %948 = vmatpush2.msra.mxu0 0.0
    %949 = vmatprep.subr.mxu0 0.0
    %950 = vmatpush2.msra.mxu0 0.0
    %951 = vmatprep.subr.mxu0 0.0
    %952 = vmatpush2.msra.mxu0 0.0
    %953 = vmatprep.subr.mxu0 0.0
    %954 = vmatpush2.msra.mxu0 0.0
    %955 = vmatprep.subr.mxu0 0.0
    %956 = vmatpush2.msra.mxu0 0.0
    %957 = vmatprep.subr.mxu0 0.0
    %958 = vmatpush2.msra.mxu0 0.0
    %959 = vmatprep.subr.mxu0 0.0
    %960 = vmatpush2.msra.mxu0 0.0
    %961 = vmatprep.subr.mxu0 0.0
    %962 = vmatpush2.msra.mxu0 0.0
    %963 = vmatprep.subr.mxu0 0.0
    %964 = vmatpush2.msra.mxu0 0.0
    %965 = vmatprep.subr.mxu0 0.0
    %966 = vmatpush2.msra.mxu0 0.0
    %967 = vmatprep.subr.mxu0 0.0
    %968 = vmatpush2.msra.mxu0 0.0
    %969 = vmatprep.mubr.f32.mxu0 0.0
    %970 = vmatmul.mubr.f32.gmra.mxu0 %v900
    %v971 = vpop.f32.mrf.mxu0
    %v972 = vadd.f32 0.0, %v971
    %v973 = vpop.f32.mrf.mxu0
    %974 = vmatprep.mubr.f32.mxu0 0.0
    %975 = vmatmul.mubr.f32.gmra.mxu0 %v903
    %v976 = vpop.f32.mrf.mxu0
    %v977 = vadd.f32 0.0, %v976
    %v978 = vpop.f32.mrf.mxu0
    %979 = vdwg.mxu0
    %v980 = vld [vmem:[#allocation7 + $0x30] sm:$0xff]
    %v982 = vsel %vm220, %v972, 0
    %v985 = vsel %vm220, %v977, 0
    %987 = vmatprep.subr.mxu0 0.0
    %988 = vmatpush1.msra.mxu0 0.0
    %989 = vmatprep.subr.mxu0 0.0
    %990 = vmatpush1.msra.mxu0 0.0
    %991 = vmatprep.subr.mxu0 0.0
    %992 = vmatpush1.msra.mxu0 0.0
    %993 = vmatprep.subr.mxu0 0.0
    %994 = vmatpush1.msra.mxu0 0.0
    %995 = vmatprep.subr.mxu0 0.0
    %996 = vmatpush1.msra.mxu0 0.0
    %997 = vmatprep.subr.mxu0 0.0
    %998 = vmatpush1.msra.mxu0 0.0
    %999 = vmatprep.subr.mxu0 0.0
    %1000 = vmatpush1.msra.mxu0 0.0
    %1001 = vmatprep.subr.mxu0 0.0
    %1002 = vmatpush1.msra.mxu0 0.0
    %1003 = vmatprep.subr.mxu0 0.0
    %1004 = vmatpush1.msra.mxu0 0.0
    %1005 = vmatprep.subr.mxu0 0.0
    %1006 = vmatpush1.msra.mxu0 0.0
    %1007 = vmatprep.subr.mxu0 0.0
    %1008 = vmatpush1.msra.mxu0 0.0
    %1009 = vmatprep.subr.mxu0 0.0
    %1010 = vmatpush1.msra.mxu0 0.0
    %1011 = vmatprep.subr.mxu0 0.0
    %1012 = vmatpush1.msra.mxu0 0.0
    %1013 = vmatprep.subr.mxu0 0.0
    %1014 = vmatpush1.msra.mxu0 0.0
    %1015 = vmatprep.subr.mxu0 0.0
    %1016 = vmatpush1.msra.mxu0 0.0
    %1017 = vmatprep.subr.mxu0 0.0
    %1018 = vmatpush1.msra.mxu0 %v980
    %1019 = vmatprep.subr.mxu0 0.0
    %1020 = vmatpush2.msra.mxu0 0.0
    %1021 = vmatprep.subr.mxu0 0.0
    %1022 = vmatpush2.msra.mxu0 0.0
    %1023 = vmatprep.subr.mxu0 0.0
    %1024 = vmatpush2.msra.mxu0 0.0
    %1025 = vmatprep.subr.mxu0 0.0
    %1026 = vmatpush2.msra.mxu0 0.0
    %1027 = vmatprep.subr.mxu0 0.0
    %1028 = vmatpush2.msra.mxu0 0.0
    %1029 = vmatprep.subr.mxu0 0.0
    %1030 = vmatpush2.msra.mxu0 0.0
    %1031 = vmatprep.subr.mxu0 0.0
    %1032 = vmatpush2.msra.mxu0 0.0
    %1033 = vmatprep.subr.mxu0 0.0
    %1034 = vmatpush2.msra.mxu0 0.0
    %1035 = vmatprep.subr.mxu0 0.0
    %1036 = vmatpush2.msra.mxu0 0.0
    %1037 = vmatprep.subr.mxu0 0.0
    %1038 = vmatpush2.msra.mxu0 0.0
    %1039 = vmatprep.subr.mxu0 0.0
    %1040 = vmatpush2.msra.mxu0 0.0
    %1041 = vmatprep.subr.mxu0 0.0
    %1042 = vmatpush2.msra.mxu0 0.0
    %1043 = vmatprep.subr.mxu0 0.0
    %1044 = vmatpush2.msra.mxu0 0.0
    %1045 = vmatprep.subr.mxu0 0.0
    %1046 = vmatpush2.msra.mxu0 0.0
    %1047 = vmatprep.subr.mxu0 0.0
    %1048 = vmatpush2.msra.mxu0 0.0
    %1049 = vmatprep.subr.mxu0 0.0
    %1050 = vmatpush2.msra.mxu0 0.0
    %1051 = vmatprep.mubr.f32.mxu0 0.0
    %1052 = vmatmul.mubr.f32.gmra.mxu0 %v982
    %v1053 = vpop.f32.mrf.mxu0
    %v1054 = vadd.f32 0.0, %v1053
    %v1055 = vpop.f32.mrf.mxu0
    %1056 = vmatprep.mubr.f32.mxu0 0.0
    %1057 = vmatmul.mubr.f32.gmra.mxu0 %v985
    %v1058 = vpop.f32.mrf.mxu0
    %v1059 = vadd.f32 0.0, %v1058
    %v1060 = vpop.f32.mrf.mxu0
    %1061 = vdwg.mxu0
    %v1062 = vadd.f32 %v772, %v1054
    %v1063 = vadd.f32 %v777, %v1059
    %1064 = vrot.lane.b32.xlu0 %v212, 104
    %v1065 = vpop.permute.xlu0 %1064
    %1066 = vrot.lane.b32.xlu0 %v213, 104
    %v1067 = vpop.permute.xlu0 %1066
    %1068 = vrot.lane.b32.xlu0 %v204, 72
    %v1069 = vpop.permute.xlu0 %1068
    %1070 = vrot.lane.b32.xlu0 %v209, 72
    %v1071 = vpop.permute.xlu0 %1070
    %v1072 = vsel %vm220, %v1065, 0
    %v1074 = vsel %vm220, %v1067, 0
    %v1076 = vsel %vm220, %v1069, 0
    %v1078 = vsel %vm220, %v1071, 0
    %1080 = vmatprep.subr.mxu0 0.0
    %1081 = vmatpush1.xpose.msra.mxu0 0.0
    %1082 = vmatprep.subr.mxu0 0.0
    %1083 = vmatpush1.xpose.msra.mxu0 0.0
    %1084 = vmatprep.subr.mxu0 0.0
    %1085 = vmatpush1.xpose.msra.mxu0 0.0
    %1086 = vmatprep.subr.mxu0 0.0
    %1087 = vmatpush1.xpose.msra.mxu0 0.0
    %1088 = vmatprep.subr.mxu0 0.0
    %1089 = vmatpush1.xpose.msra.mxu0 0.0
    %1090 = vmatprep.subr.mxu0 0.0
    %1091 = vmatpush1.xpose.msra.mxu0 0.0
    %1092 = vmatprep.subr.mxu0 0.0
    %1093 = vmatpush1.xpose.msra.mxu0 0.0
    %1094 = vmatprep.subr.mxu0 0.0
    %1095 = vmatpush1.xpose.msra.mxu0 0.0
    %1096 = vmatprep.subr.mxu0 0.0
    %1097 = vmatpush1.xpose.msra.mxu0 0.0
    %1098 = vmatprep.subr.mxu0 0.0
    %1099 = vmatpush1.xpose.msra.mxu0 0.0
    %1100 = vmatprep.subr.mxu0 0.0
    %1101 = vmatpush1.xpose.msra.mxu0 0.0
    %1102 = vmatprep.subr.mxu0 0.0
    %1103 = vmatpush1.xpose.msra.mxu0 0.0
    %1104 = vmatprep.subr.mxu0 0.0
    %1105 = vmatpush1.xpose.msra.mxu0 0.0
    %1106 = vmatprep.subr.mxu0 0.0
    %1107 = vmatpush1.xpose.msra.mxu0 0.0
    %1108 = vmatprep.subr.mxu0 0.0
    %1109 = vmatpush1.xpose.msra.mxu0 %v1078
    %1110 = vmatprep.subr.mxu0 0.0
    %1111 = vmatpush1.xpose.msra.mxu0 %v1076
    %1112 = vmatprep.subr.mxu0 0.0
    %1113 = vmatpush2.xpose.msra.mxu0 0.0
    %1114 = vmatprep.subr.mxu0 0.0
    %1115 = vmatpush2.xpose.msra.mxu0 0.0
    %1116 = vmatprep.subr.mxu0 0.0
    %1117 = vmatpush2.xpose.msra.mxu0 0.0
    %1118 = vmatprep.subr.mxu0 0.0
    %1119 = vmatpush2.xpose.msra.mxu0 0.0
    %1120 = vmatprep.subr.mxu0 0.0
    %1121 = vmatpush2.xpose.msra.mxu0 0.0
    %1122 = vmatprep.subr.mxu0 0.0
    %1123 = vmatpush2.xpose.msra.mxu0 0.0
    %1124 = vmatprep.subr.mxu0 0.0
    %1125 = vmatpush2.xpose.msra.mxu0 0.0
    %1126 = vmatprep.subr.mxu0 0.0
    %1127 = vmatpush2.xpose.msra.mxu0 0.0
    %1128 = vmatprep.subr.mxu0 0.0
    %1129 = vmatpush2.xpose.msra.mxu0 0.0
    %1130 = vmatprep.subr.mxu0 0.0
    %1131 = vmatpush2.xpose.msra.mxu0 0.0
    %1132 = vmatprep.subr.mxu0 0.0
    %1133 = vmatpush2.xpose.msra.mxu0 0.0
    %1134 = vmatprep.subr.mxu0 0.0
    %1135 = vmatpush2.xpose.msra.mxu0 0.0
    %1136 = vmatprep.subr.mxu0 0.0
    %1137 = vmatpush2.xpose.msra.mxu0 0.0
    %1138 = vmatprep.subr.mxu0 0.0
    %1139 = vmatpush2.xpose.msra.mxu0 0.0
    %1140 = vmatprep.subr.mxu0 0.0
    %1141 = vmatpush2.xpose.msra.mxu0 0.0
    %1142 = vmatprep.subr.mxu0 0.0
    %1143 = vmatpush2.xpose.msra.mxu0 0.0
    %1144 = vmatprep.mubr.f32.mxu0 0.0
    %1145 = vmatmul.mubr.f32.gmra.mxu0 %v1072
    %v1146 = vpop.f32.mrf.mxu0
    %v1147 = vadd.f32 %v73, %v1146
    %v1148 = vpop.f32.mrf.mxu0
    %1149 = vmatprep.mubr.f32.mxu0 0.0
    %1150 = vmatmul.mubr.f32.gmra.mxu0 %v1074
    %v1151 = vpop.f32.mrf.mxu0
    %v1152 = vadd.f32 %v74, %v1151
    %v1153 = vpop.f32.mrf.mxu0
    %1154 = vdwg.mxu0
    %v1155 = vsel %vm306, %v1147, -inf
    %1156 = vmax.xlane.f32.xlu0 %v1155
    %v1157 = vpop.xlane.xlu0 %1156
    %v1158 = vsel %vm306, %v1152, -inf
    %1159 = vmax.xlane.f32.xlu0 %v1158
    %v1160 = vpop.xlane.xlu0 %1159
    %v1161 = vsub.f32 %v1147, %v1157
    %v1162 = vsub.f32 %v1152, %v1160
    %v1163 = vmul.f32 %v1161, 1.442695
    %v1164 = vpow.pop %v1163
    %v1165 = vmul.f32 %v1162, 1.442695
    %v1166 = vpow.pop %v1165
    %v1167 = vsel %vm306, %v1164, 0.0
    %1168 = vadd.xlane.f32.xlu0 %v1167
    %v1169 = vpop.xlane.xlu0 %1168
    %v1170 = vsel %vm306, %v1166, 0.0
    %1171 = vadd.xlane.f32.xlu0 %v1170
    %v1172 = vpop.xlane.xlu0 %1171
    %v1173 = vrcp.pop %v1169
    %v1174 = vrcp.pop %v1172
    %v1175 = vmul.f32 %v1164, %v1173
    %v1176 = vmul.f32 %v1166, %v1174
    %1177 = vrot.lane.b32.xlu0 %v204, 40
    %v1178 = vpop.permute.xlu0 %1177
    %1179 = vrot.lane.b32.xlu0 %v209, 40
    %v1180 = vpop.permute.xlu0 %1179
    %v1184 = vsel %vm306, %v1175, 0
    %v1187 = vsel %vm306, %v1176, 0
    %1189 = vmatprep.subr.mxu0 0.0
    %1190 = vmatpush1.msra.mxu0 0.0
    %1191 = vmatprep.subr.mxu0 0.0
    %1192 = vmatpush1.msra.mxu0 0.0
    %1193 = vmatprep.subr.mxu0 0.0
    %1194 = vmatpush1.msra.mxu0 0.0
    %1195 = vmatprep.subr.mxu0 0.0
    %1196 = vmatpush1.msra.mxu0 0.0
    %1197 = vmatprep.subr.mxu0 0.0
    %1198 = vmatpush1.msra.mxu0 0.0
    %1199 = vmatprep.subr.mxu0 0.0
    %1200 = vmatpush1.msra.mxu0 0.0
    %1201 = vmatprep.subr.mxu0 0.0
    %1202 = vmatpush1.msra.mxu0 0.0
    %1203 = vmatprep.subr.mxu0 0.0
    %1204 = vmatpush1.msra.mxu0 0.0
    %1205 = vmatprep.subr.mxu0 0.0
    %1206 = vmatpush1.msra.mxu0 0.0
    %1207 = vmatprep.subr.mxu0 0.0
    %1208 = vmatpush1.msra.mxu0 0.0
    %1209 = vmatprep.subr.mxu0 0.0
    %1210 = vmatpush1.msra.mxu0 0.0
    %1211 = vmatprep.subr.mxu0 0.0
    %1212 = vmatpush1.msra.mxu0 0.0
    %1213 = vmatprep.subr.mxu0 0.0
    %1214 = vmatpush1.msra.mxu0 0.0
    %1215 = vmatprep.subr.mxu0 0.0
    %1216 = vmatpush1.msra.mxu0 0.0
    %1217 = vmatprep.subr.mxu0 0.0
    %1218 = vmatpush1.msra.mxu0 %v1180
    %1219 = vmatprep.subr.mxu0 0.0
    %1220 = vmatpush1.msra.mxu0 %v1178
    %1221 = vmatprep.subr.mxu0 0.0
    %1222 = vmatpush2.msra.mxu0 0.0
    %1223 = vmatprep.subr.mxu0 0.0
    %1224 = vmatpush2.msra.mxu0 0.0
    %1225 = vmatprep.subr.mxu0 0.0
    %1226 = vmatpush2.msra.mxu0 0.0
    %1227 = vmatprep.subr.mxu0 0.0
    %1228 = vmatpush2.msra.mxu0 0.0
    %1229 = vmatprep.subr.mxu0 0.0
    %1230 = vmatpush2.msra.mxu0 0.0
    %1231 = vmatprep.subr.mxu0 0.0
    %1232 = vmatpush2.msra.mxu0 0.0
    %1233 = vmatprep.subr.mxu0 0.0
    %1234 = vmatpush2.msra.mxu0 0.0
    %1235 = vmatprep.subr.mxu0 0.0
    %1236 = vmatpush2.msra.mxu0 0.0
    %1237 = vmatprep.subr.mxu0 0.0
    %1238 = vmatpush2.msra.mxu0 0.0
    %1239 = vmatprep.subr.mxu0 0.0
    %1240 = vmatpush2.msra.mxu0 0.0
    %1241 = vmatprep.subr.mxu0 0.0
    %1242 = vmatpush2.msra.mxu0 0.0
    %1243 = vmatprep.subr.mxu0 0.0
    %1244 = vmatpush2.msra.mxu0 0.0
    %1245 = vmatprep.subr.mxu0 0.0
    %1246 = vmatpush2.msra.mxu0 0.0
    %1247 = vmatprep.subr.mxu0 0.0
    %1248 = vmatpush2.msra.mxu0 0.0
    %1249 = vmatprep.subr.mxu0 0.0
    %1250 = vmatpush2.msra.mxu0 0.0
    %1251 = vmatprep.subr.mxu0 0.0
    %1252 = vmatpush2.msra.mxu0 0.0
    %1253 = vmatprep.mubr.f32.mxu0 0.0
    %1254 = vmatmul.mubr.f32.gmra.mxu0 %v1184
    %v1255 = vpop.f32.mrf.mxu0
    %v1256 = vadd.f32 0.0, %v1255
    %v1257 = vpop.f32.mrf.mxu0
    %1258 = vmatprep.mubr.f32.mxu0 0.0
    %1259 = vmatmul.mubr.f32.gmra.mxu0 %v1187
    %v1260 = vpop.f32.mrf.mxu0
    %v1261 = vadd.f32 0.0, %v1260
    %v1262 = vpop.f32.mrf.mxu0
    %1263 = vdwg.mxu0
    %v1264 = vld [vmem:[#allocation7 + $0x38] sm:$0xff]
    %v1266 = vsel %vm220, %v1256, 0
    %v1269 = vsel %vm220, %v1261, 0
    %1271 = vmatprep.subr.mxu0 0.0
    %1272 = vmatpush1.msra.mxu0 0.0
    %1273 = vmatprep.subr.mxu0 0.0
    %1274 = vmatpush1.msra.mxu0 0.0
    %1275 = vmatprep.subr.mxu0 0.0
    %1276 = vmatpush1.msra.mxu0 0.0
    %1277 = vmatprep.subr.mxu0 0.0
    %1278 = vmatpush1.msra.mxu0 0.0
    %1279 = vmatprep.subr.mxu0 0.0
    %1280 = vmatpush1.msra.mxu0 0.0
    %1281 = vmatprep.subr.mxu0 0.0
    %1282 = vmatpush1.msra.mxu0 0.0
    %1283 = vmatprep.subr.mxu0 0.0
    %1284 = vmatpush1.msra.mxu0 0.0
    %1285 = vmatprep.subr.mxu0 0.0
    %1286 = vmatpush1.msra.mxu0 0.0
    %1287 = vmatprep.subr.mxu0 0.0
    %1288 = vmatpush1.msra.mxu0 0.0
    %1289 = vmatprep.subr.mxu0 0.0
    %1290 = vmatpush1.msra.mxu0 0.0
    %1291 = vmatprep.subr.mxu0 0.0
    %1292 = vmatpush1.msra.mxu0 0.0
    %1293 = vmatprep.subr.mxu0 0.0
    %1294 = vmatpush1.msra.mxu0 0.0
    %1295 = vmatprep.subr.mxu0 0.0
    %1296 = vmatpush1.msra.mxu0 0.0
    %1297 = vmatprep.subr.mxu0 0.0
    %1298 = vmatpush1.msra.mxu0 0.0
    %1299 = vmatprep.subr.mxu0 0.0
    %1300 = vmatpush1.msra.mxu0 0.0
    %1301 = vmatprep.subr.mxu0 0.0
    %1302 = vmatpush1.msra.mxu0 %v1264
    %1303 = vmatprep.subr.mxu0 0.0
    %1304 = vmatpush2.msra.mxu0 0.0
    %1305 = vmatprep.subr.mxu0 0.0
    %1306 = vmatpush2.msra.mxu0 0.0
    %1307 = vmatprep.subr.mxu0 0.0
    %1308 = vmatpush2.msra.mxu0 0.0
    %1309 = vmatprep.subr.mxu0 0.0
    %1310 = vmatpush2.msra.mxu0 0.0
    %1311 = vmatprep.subr.mxu0 0.0
    %1312 = vmatpush2.msra.mxu0 0.0
    %1313 = vmatprep.subr.mxu0 0.0
    %1314 = vmatpush2.msra.mxu0 0.0
    %1315 = vmatprep.subr.mxu0 0.0
    %1316 = vmatpush2.msra.mxu0 0.0
    %1317 = vmatprep.subr.mxu0 0.0
    %1318 = vmatpush2.msra.mxu0 0.0
    %1319 = vmatprep.subr.mxu0 0.0
    %1320 = vmatpush2.msra.mxu0 0.0
    %1321 = vmatprep.subr.mxu0 0.0
    %1322 = vmatpush2.msra.mxu0 0.0
    %1323 = vmatprep.subr.mxu0 0.0
    %1324 = vmatpush2.msra.mxu0 0.0
    %1325 = vmatprep.subr.mxu0 0.0
    %1326 = vmatpush2.msra.mxu0 0.0
    %1327 = vmatprep.subr.mxu0 0.0
    %1328 = vmatpush2.msra.mxu0 0.0
    %1329 = vmatprep.subr.mxu0 0.0
    %1330 = vmatpush2.msra.mxu0 0.0
    %1331 = vmatprep.subr.mxu0 0.0
    %1332 = vmatpush2.msra.mxu0 0.0
    %1333 = vmatprep.subr.mxu0 0.0
    %1334 = vmatpush2.msra.mxu0 0.0
    %1335 = vmatprep.mubr.f32.mxu0 0.0
    %1336 = vmatmul.mubr.f32.gmra.mxu0 %v1266
    %v1337 = vpop.f32.mrf.mxu0
    %v1338 = vadd.f32 0.0, %v1337
    %v1339 = vpop.f32.mrf.mxu0
    %1340 = vmatprep.mubr.f32.mxu0 0.0
    %1341 = vmatmul.mubr.f32.gmra.mxu0 %v1269
    %v1342 = vpop.f32.mrf.mxu0
    %v1343 = vadd.f32 0.0, %v1342
    %v1344 = vpop.f32.mrf.mxu0
    %1345 = vdwg.mxu0
    %v1346 = vadd.f32 %v1062, %v1338
    %v1347 = vadd.f32 %v1063, %v1343
    %v1348 = vlaneseq
    %v1349 = vshrl.u32 %v1348, 7
    %v1350 = vsub.s32 0, %v1349
    %v1351 = vrot.slane %v80, %v1350
    %v1352 = vadd.f32 %v1346, %v1351
    %v1353 = vadd.f32 %v1347, %v1351
    %v1354 = vadd.f32 %v1352, %v71
    %v1355 = vadd.f32 %v1353, %v72
    %v1356 = vsel %vm83, %v1354, 0.0
    %1357 = vadd.xlane.f32.xlu0 %v1356
    %v1358 = vpop.xlane.xlu0 %1357
    %v1359 = vsel %vm83, %v1355, 0.0
    %1360 = vadd.xlane.f32.xlu0 %v1359
    %v1361 = vpop.xlane.xlu0 %1360
    %v1362 = vmul.f32 %v1358, %v90
    %v1363 = vmul.f32 %v1361, %v90
    %v1364 = vsub.f32 %v1354, %v1362
    %v1365 = vsub.f32 %v1355, %v1363
    %v1366 = vmul.f32 %v1364, %v1364
    %v1367 = vmul.f32 %v1365, %v1365
    %v1368 = vsel %vm83, %v1366, 0.0
    %1369 = vadd.xlane.f32.xlu0 %v1368
    %v1370 = vpop.xlane.xlu0 %1369
    %v1371 = vsel %vm83, %v1367, 0.0
    %1372 = vadd.xlane.f32.xlu0 %v1371
    %v1373 = vpop.xlane.xlu0 %1372
    %v1374 = vmul.f32 %v1370, %v90
    %v1375 = vmul.f32 %v1373, %v90
    %v1376 = vadd.f32 %v1374, 1e-06
    %v1377 = vadd.f32 %v1375, 1e-06
    %v1378 = vrsqrt.pop %v1376
    %v1379 = vrsqrt.pop %v1377
    %v1380 = vmul.f32 %v1364, %v1378
    %v1381 = vmul.f32 %v1365, %v1379
    %v1382 = vlaneseq
    %v1383 = vshrl.u32 %v1382, 7
    %v1384 = vsub.s32 0, %v1383
    %v1385 = vrot.slane %v77, %v1384
    %v1386 = vmul.f32 %v1380, %v1385
    %v1387 = vmul.f32 %v1381, %v1385
    %v1388 = vlaneseq
    %v1389 = vshrl.u32 %v1388, 7
    %v1390 = vsub.s32 0, %v1389
    %v1391 = vrot.slane %v78, %v1390
    %v1392 = vadd.f32 %v1386, %v1391
    %v1393 = vadd.f32 %v1387, %v1391
    %v1394 = vld [vmem:[#allocation7 + $0x40] sm:$0xff]
    %v1395 = vld [vmem:[#allocation7 + $0x48] sm:$0xff]
    %v1396 = vld [vmem:[#allocation7 + $0x50] sm:$0xff]
    %v1397 = vld [vmem:[#allocation7 + $0x58] sm:$0xff]
    %v1398 = vlaneseq
    %v1399 = vshrl.u32 %v1398, 7
    %v1400 = vsub.s32 0, %v1399
    %v1401 = vrot.slane %v81, %v1400
    %v1403 = vsel %vm83, %v1392, 0
    %v1406 = vsel %vm83, %v1393, 0
    %1408 = vmatprep.subr.mxu0 0.0
    %1409 = vmatpush1.msra.mxu0 0.0
    %1410 = vmatprep.subr.mxu0 0.0
    %1411 = vmatpush1.msra.mxu0 0.0
    %1412 = vmatprep.subr.mxu0 0.0
    %1413 = vmatpush1.msra.mxu0 0.0
    %1414 = vmatprep.subr.mxu0 0.0
    %1415 = vmatpush1.msra.mxu0 0.0
    %1416 = vmatprep.subr.mxu0 0.0
    %1417 = vmatpush1.msra.mxu0 0.0
    %1418 = vmatprep.subr.mxu0 0.0
    %1419 = vmatpush1.msra.mxu0 0.0
    %1420 = vmatprep.subr.mxu0 0.0
    %1421 = vmatpush1.msra.mxu0 0.0
    %1422 = vmatprep.subr.mxu0 0.0
    %1423 = vmatpush1.msra.mxu0 0.0
    %1424 = vmatprep.subr.mxu0 0.0
    %1425 = vmatpush1.msra.mxu0 0.0
    %1426 = vmatprep.subr.mxu0 0.0
    %1427 = vmatpush1.msra.mxu0 0.0
    %1428 = vmatprep.subr.mxu0 0.0
    %1429 = vmatpush1.msra.mxu0 0.0
    %1430 = vmatprep.subr.mxu0 0.0
    %1431 = vmatpush1.msra.mxu0 0.0
    %1432 = vmatprep.subr.mxu0 0.0
    %1433 = vmatpush1.msra.mxu0 %v1397
    %1434 = vmatprep.subr.mxu0 0.0
    %1435 = vmatpush1.msra.mxu0 %v1396
    %1436 = vmatprep.subr.mxu0 0.0
    %1437 = vmatpush1.msra.mxu0 %v1395
    %1438 = vmatprep.subr.mxu0 0.0
    %1439 = vmatpush1.msra.mxu0 %v1394
    %1440 = vmatprep.subr.mxu0 0.0
    %1441 = vmatpush2.msra.mxu0 0.0
    %1442 = vmatprep.subr.mxu0 0.0
    %1443 = vmatpush2.msra.mxu0 0.0
    %1444 = vmatprep.subr.mxu0 0.0
    %1445 = vmatpush2.msra.mxu0 0.0
    %1446 = vmatprep.subr.mxu0 0.0
    %1447 = vmatpush2.msra.mxu0 0.0
    %1448 = vmatprep.subr.mxu0 0.0
    %1449 = vmatpush2.msra.mxu0 0.0
    %1450 = vmatprep.subr.mxu0 0.0
    %1451 = vmatpush2.msra.mxu0 0.0
    %1452 = vmatprep.subr.mxu0 0.0
    %1453 = vmatpush2.msra.mxu0 0.0
    %1454 = vmatprep.subr.mxu0 0.0
    %1455 = vmatpush2.msra.mxu0 0.0
    %1456 = vmatprep.subr.mxu0 0.0
    %1457 = vmatpush2.msra.mxu0 0.0
    %1458 = vmatprep.subr.mxu0 0.0
    %1459 = vmatpush2.msra.mxu0 0.0
    %1460 = vmatprep.subr.mxu0 0.0
    %1461 = vmatpush2.msra.mxu0 0.0
    %1462 = vmatprep.subr.mxu0 0.0
    %1463 = vmatpush2.msra.mxu0 0.0
    %1464 = vmatprep.subr.mxu0 0.0
    %1465 = vmatpush2.msra.mxu0 0.0
    %1466 = vmatprep.subr.mxu0 0.0
    %1467 = vmatpush2.msra.mxu0 0.0
    %1468 = vmatprep.subr.mxu0 0.0
    %1469 = vmatpush2.msra.mxu0 0.0
    %1470 = vmatprep.subr.mxu0 0.0
    %1471 = vmatpush2.msra.mxu0 0.0
    %1472 = vmatprep.mubr.f32.mxu0 0.0
    %1473 = vmatmul.mubr.f32.gmra.mxu0 %v1403
    %v1474 = vpop.f32.mrf.mxu0
    %v1475 = vadd.f32 %v1401, %v1474
    %v1476 = vpop.f32.mrf.mxu0
    %1477 = vmatprep.mubr.f32.mxu0 0.0
    %1478 = vmatmul.mubr.f32.gmra.mxu0 %v1406
    %v1479 = vpop.f32.mrf.mxu0
    %v1480 = vadd.f32 %v1401, %v1479
    %v1481 = vpop.f32.mrf.mxu0
    %1482 = vdwg.mxu0
    %v1483 = vmax.f32 %v1475, 0.0
    %v1484 = vmax.f32 %v1480, 0.0
    %v1485 = vld [vmem:[#allocation7 + $0x60] sm:$0xff]
    %v1486 = vld [vmem:[#allocation7 + $0x68] sm:$0xff]
    %v1487 = vld [vmem:[#allocation7 + $0x70] sm:$0xff]
    %v1488 = vld [vmem:[#allocation7 + $0x78] sm:$0xff]
    %v1489 = vld [vmem:[#allocation7 + $0x80] sm:$0xff]
    %v1490 = vld [vmem:[#allocation7 + $0x88] sm:$0xff]
    %v1491 = vld [vmem:[#allocation7 + $0x90] sm:$0xff]
    %v1492 = vld [vmem:[#allocation7 + $0x98] sm:$0xff]
    %v1493 = vlaneseq
    %v1494 = vshrl.u32 %v1493, 7
    %v1495 = vsub.s32 0, %v1494
    %v1496 = vrot.slane %v82, %v1495
    %vm1497 = vcmask 523264
    %v1499 = vsel %vm1497, %v1483, 0
    %v1502 = vsel %vm1497, %v1484, 0
    %1504 = vmatprep.subr.mxu0 0.0
    %1505 = vmatpush1.msra.mxu0 0.0
    %1506 = vmatprep.subr.mxu0 0.0
    %1507 = vmatpush1.msra.mxu0 0.0
    %1508 = vmatprep.subr.mxu0 0.0
    %1509 = vmatpush1.msra.mxu0 0.0
    %1510 = vmatprep.subr.mxu0 0.0
    %1511 = vmatpush1.msra.mxu0 0.0
    %1512 = vmatprep.subr.mxu0 0.0
    %1513 = vmatpush1.msra.mxu0 0.0
    %1514 = vmatprep.subr.mxu0 0.0
    %1515 = vmatpush1.msra.mxu0 0.0
    %1516 = vmatprep.subr.mxu0 0.0
    %1517 = vmatpush1.msra.mxu0 0.0
    %1518 = vmatprep.subr.mxu0 0.0
    %1519 = vmatpush1.msra.mxu0 0.0
    %1520 = vmatprep.subr.mxu0 0.0
    %1521 = vmatpush1.msra.mxu0 %v1492
    %1522 = vmatprep.subr.mxu0 0.0
    %1523 = vmatpush1.msra.mxu0 %v1491
    %1524 = vmatprep.subr.mxu0 0.0
    %1525 = vmatpush1.msra.mxu0 %v1490
    %1526 = vmatprep.subr.mxu0 0.0
    %1527 = vmatpush1.msra.mxu0 %v1489
    %1528 = vmatprep.subr.mxu0 0.0
    %1529 = vmatpush1.msra.mxu0 %v1488
    %1530 = vmatprep.subr.mxu0 0.0
    %1531 = vmatpush1.msra.mxu0 %v1487
    %1532 = vmatprep.subr.mxu0 0.0
    %1533 = vmatpush1.msra.mxu0 %v1486
    %1534 = vmatprep.subr.mxu0 0.0
    %1535 = vmatpush1.msra.mxu0 %v1485
    %1536 = vmatprep.subr.mxu0 0.0
    %1537 = vmatpush2.msra.mxu0 0.0
    %1538 = vmatprep.subr.mxu0 0.0
    %1539 = vmatpush2.msra.mxu0 0.0
    %1540 = vmatprep.subr.mxu0 0.0
    %1541 = vmatpush2.msra.mxu0 0.0
    %1542 = vmatprep.subr.mxu0 0.0
    %1543 = vmatpush2.msra.mxu0 0.0
    %1544 = vmatprep.subr.mxu0 0.0
    %1545 = vmatpush2.msra.mxu0 0.0
    %1546 = vmatprep.subr.mxu0 0.0
    %1547 = vmatpush2.msra.mxu0 0.0
    %1548 = vmatprep.subr.mxu0 0.0
    %1549 = vmatpush2.msra.mxu0 0.0
    %1550 = vmatprep.subr.mxu0 0.0
    %1551 = vmatpush2.msra.mxu0 0.0
    %1552 = vmatprep.subr.mxu0 0.0
    %1553 = vmatpush2.msra.mxu0 0.0
    %1554 = vmatprep.subr.mxu0 0.0
    %1555 = vmatpush2.msra.mxu0 0.0
    %1556 = vmatprep.subr.mxu0 0.0
    %1557 = vmatpush2.msra.mxu0 0.0
    %1558 = vmatprep.subr.mxu0 0.0
    %1559 = vmatpush2.msra.mxu0 0.0
    %1560 = vmatprep.subr.mxu0 0.0
    %1561 = vmatpush2.msra.mxu0 0.0
    %1562 = vmatprep.subr.mxu0 0.0
    %1563 = vmatpush2.msra.mxu0 0.0
    %1564 = vmatprep.subr.mxu0 0.0
    %1565 = vmatpush2.msra.mxu0 0.0
    %1566 = vmatprep.subr.mxu0 0.0
    %1567 = vmatpush2.msra.mxu0 0.0
    %1568 = vmatprep.mubr.f32.mxu0 0.0
    %1569 = vmatmul.mubr.f32.gmra.mxu0 %v1499
    %v1570 = vpop.f32.mrf.mxu0
    %v1571 = vadd.f32 %v1496, %v1570
    %v1572 = vpop.f32.mrf.mxu0
    %1573 = vmatprep.mubr.f32.mxu0 0.0
    %1574 = vmatmul.mubr.f32.gmra.mxu0 %v1502
    %v1575 = vpop.f32.mrf.mxu0
    %v1576 = vadd.f32 %v1496, %v1575
    %v1577 = vpop.f32.mrf.mxu0
    %1578 = vdwg.mxu0
    %v1579 = vadd.f32 %v1571, %v1354
    %v1580 = vadd.f32 %v1576, %v1355
    %1581 = vst.msk [vmem:[#allocation10] sm:$0xff] %vm83, %v1579
    %1582 = vst.msk [vmem:[#allocation10 + $0x8] sm:$0xff] %vm83, %v1580
    // Predicated region
    $region34: #{tpu_custom_call.1} parent=1 // pred_check
      _
    $region35: #{tpu_custom_call.1} parent=1 // pred_check_branch
      %1584 = sbr.rel (0) target = $region37
    $region36: #{tpu_custom_call.1} parent=1 // pred_region
      %s1586 = ssub.s32 256, 256
      %1587 = vsyncadd [#allocation4], %s1586
      %s1588 = sshll.u32 [#allocation10], 4
      %s1589 = int_to_ptr.vmem [resolvable:$true] %s1588
      %1594 = dma.vmem_to_hbm [thread:$0]  %s1589, 256, %s4, [#allocation4], 128, 128, 8
    $region37: #{tpu_custom_call.1} parent=1 // pred_fallthru
      _
    // Predicated region
    $region38: #{tpu_custom_call.1} parent=1 // pred_check
      _
    $region39: #{tpu_custom_call.1} parent=1 // pred_check_branch
      %1596 = sbr.rel (0) target = $region41
    $region40: #{tpu_custom_call.1} parent=1 // pred_region
      %1597 = dma.done [#allocation4], 256
    $region41: #{tpu_custom_call.1} parent=1 // pred_fallthru
      _
    %1598 = vsyncpa [#allocation3], 1
    %1599 = vsyncpa [#allocation6], 1
    %1600 = vsyncpa [#allocation9], 1
    %1601 = vsyncpa [#allocation4], 1

</llo_original>
